<compile_context>
chip_gen: v5e
topology: v5e:2x2
jax: 0.10.0
libtpu: 0.0.40
codegen_flags: <defaults>
</compile_context>

<pallas_src>
import jax
import jax.numpy as jnp
from jax.experimental import pallas as pl
from jax.experimental.pallas import tpu as pltpu

SNR_SIDE = 32                     # 2 ** scale with scale=5 in snr_calculator
_TILE_TARGET_BYTES = 4 << 20      # ~4 MiB per input tile per grid step
_VMEM_LIMIT_BYTES = 48 << 20      # safe on v7x (64 MiB physical), ample on v5e/v6e


def _noise_snr_kernel(sigma_ref, proj_ref, noise_ref, poolt_ref,
                      out_ref, stats_ref):
    p = proj_ref[...]              # (G, S, S) native dtype
    n = noise_ref[...]             # (G, S, S) native dtype
    sigma = sigma_ref[0]           # f32 scalar, lives in SMEM

    # --- additive white gaussian noise, all in native dtype (bf16 VALU ok) ---
    out_ref[...] = (p + n * sigma.astype(p.dtype)).astype(out_ref.dtype)

    G, S, _ = p.shape
    f = S // SNR_SIDE
    poolt = poolt_ref[...]         # (S, 32), entries 1/f, same dtype as p

    # --- stage 1: pool columns with one tall-M matmul per tensor ------------
    #     (M = G*S, K = S, N = 32) -> contracts the lane axis on the MXU,
    #     accumulates in f32, no f32 up-cast of the big operands.
    pc1 = jnp.dot(p.reshape(G * S, S), poolt,
                  preferred_element_type=jnp.float32)        # (G*S, 32) f32
    pn1 = jnp.dot(n.reshape(G * S, S), poolt,
                  preferred_element_type=jnp.float32)        # (G*S, 32) f32

    # --- stage 2: pool rows via a group-reduce on the small f32 intermediate
    inv_f = 1.0 / f
    pc = jnp.sum(pc1.reshape(G * SNR_SIDE, f, SNR_SIDE), axis=1) * inv_f
    pn = jnp.sum(pn1.reshape(G * SNR_SIDE, f, SNR_SIDE), axis=1) * inv_f
    pc = pc.reshape(G, SNR_SIDE, SNR_SIDE)                   # pooled clean
    pn = pn.reshape(G, SNR_SIDE, SNR_SIDE)                   # pooled noise

    # --- per-batch squared Frobenius norms, packed into one (G, 1, 2) block -
    csq = jnp.sum(jnp.sum(pc * pc, axis=2, keepdims=True), axis=1, keepdims=True)
    nsq = jnp.sum(jnp.sum(pn * pn, axis=2, keepdims=True), axis=1, keepdims=True)
    stats_ref[...] = jnp.concatenate([csq, nsq], axis=2)     # (G, 1, 2)


def _avgpool_t(in_side: int, out_side: int, dtype) -> jnp.ndarray:
    """(in_side, out_side) operator P^T such that x @ P^T pools columns."""
    assert in_side % out_side == 0
    f = in_side // out_side
    pt = jnp.repeat(jnp.eye(out_side, dtype=jnp.float32), f, axis=0) / f
    return pt.astype(dtype)        # 1/f is exact in bf16 for power-of-two f


def _pick_batch_group(B: int, S: int, itemsize: int) -> int:
    """Largest G <= B whose (G, S, S) input tile is <= ~4 MiB."""
    bytes_per_img = S * S * itemsize
    return max(1, min(B, _TILE_TARGET_BYTES // bytes_per_img))


@jax.jit
def noise_forward_pallas(proj, noise, sigma):
    B, C, S, S2 = proj.shape
    assert C == 1 and S == S2 and S % SNR_SIDE == 0

    dtype = proj.dtype
    noise = noise.astype(dtype)
    p3 = proj.reshape(B, S, S)                 # free reshapes (contiguous)
    n3 = noise.reshape(B, S, S)

    poolt = _avgpool_t(S, SNR_SIDE, dtype)     # (S, 32) in native dtype
    sigma_f32 = jnp.asarray(sigma, jnp.float32)
    sigma_arr = sigma_f32.reshape((1,))

    G = _pick_batch_group(B, S, jnp.dtype(dtype).itemsize)
    num_blocks = pl.cdiv(B, G)                 # partial edge block is safe

    out3, stats = pl.pallas_call(
        _noise_snr_kernel,
        out_shape=(
            jax.ShapeDtypeStruct((B, S, S), dtype),
            jax.ShapeDtypeStruct((B, 1, 2), jnp.float32),
        ),
        grid=(num_blocks,),
        in_specs=[
            pl.BlockSpec(memory_space=pltpu.MemorySpace.SMEM),   # sigma
            pl.BlockSpec((G, S, S), lambda b: (b, 0, 0)),        # proj
            pl.BlockSpec((G, S, S), lambda b: (b, 0, 0)),        # noise
            pl.BlockSpec((S, SNR_SIDE), lambda b: (0, 0)),       # pool^T (const idx)
        ],
        out_specs=(
            pl.BlockSpec((G, S, S), lambda b: (b, 0, 0)),        # noisy out
            pl.BlockSpec((G, 1, 2), lambda b: (b, 0, 0)),        # [||pc||^2, ||pn||^2]
        ),
        compiler_params=pltpu.CompilerParams(
            dimension_semantics=("parallel",),
            vmem_limit_bytes=_VMEM_LIMIT_BYTES,
        ),
    )(sigma_arr, p3, n3, poolt)

    num = stats[:, 0, 0]
    den = (sigma_f32 * sigma_f32) * stats[:, 0, 1]   # linearity of avg-pool
    snr = jnp.mean(10.0 * jnp.log10(num / den))
    return out3.reshape(B, 1, S, S), snr


class NoiseConfig:
    def __init__(self, gt_side_len, noise_type="gaussian"):
        self.gt_side_len = gt_side_len
        self.noise_type = noise_type


class Noise:
    """JAX/Pallas port of the PyTorch Noise module (gaussian noise path)."""

    def __init__(self, config):
        self.config = config
        self.scalar = jnp.zeros((1,), jnp.float32)   # matches torch.Tensor([0])
        self.current_snr = 100.0                     # sigma kept constant to 1

    def __call__(self, proj, noise_params=None, rng_key=None):
        noise_sigma = jnp.exp(self.scalar[0])        # == 1.0
        if noise_params is not None and "noise" in noise_params:
            noise = noise_params["noise"]
        else:
            if rng_key is None:
                rng_key = jax.random.PRNGKey(0)
            gt = self.config.gt_side_len
            noise = jax.random.normal(
                rng_key, (proj.shape[0], 1, gt, gt), jnp.float32)
            if proj.shape[-1] != gt:
                # glue: avg-pool downsample of the freshly drawn noise
                f = gt // proj.shape[-1]
                noise = noise.reshape(
                    proj.shape[0], 1, proj.shape[-1], f,
                    proj.shape[-1], f).mean(axis=(3, 5))
        if self.config.noise_type == "poisson":
            # TODO(synk): add_poisson is undefined in the reference source; poisson path not ported.
            raise NotImplementedError("poisson noise path not implemented")
        out, snr = noise_forward_pallas(proj, noise, noise_sigma)
        # keep snr as a device scalar -> no forced device->host sync per call
        self.current_snr = snr
        return out


if __name__ == "__main__":
    key = jax.random.PRNGKey(0)
    k_proj, k_noise = jax.random.split(key)
    B, S = 2, 64
    proj = jax.random.normal(k_proj, (B, 1, S, S), jnp.float32)
    noise = jax.random.normal(k_noise, (B, 1, S, S), jnp.float32)

    cfg = NoiseConfig(gt_side_len=S, noise_type="gaussian")
    mod = Noise(cfg)

    out = mod(proj, noise_params={"noise": noise})
    out = jax.block_until_ready(out)

    # pure-JAX reference check
    ref_out = proj + 1.0 * noise
    f = S // SNR_SIDE

    def ds(x):
        return x.reshape(B, 1, SNR_SIDE, f, SNR_SIDE, f).mean(axis=(3, 5))

    c, nz = ds(proj), ds(ref_out)
    ref_snr = float(jnp.mean(10.0 * jnp.log10(
        jnp.sum(c.reshape(B, -1) ** 2, axis=1)
        / jnp.sum((nz - c).reshape(B, -1) ** 2, axis=1))))

    assert out.shape == (B, 1, S, S)
    assert jnp.allclose(out, ref_out, atol=1e-5), "noisy projection mismatch"
    assert abs(float(mod.current_snr) - ref_snr) < 1e-3, "snr mismatch"
    print("KERNEL_OK")
</pallas_src>

<mosaic_0001>
module attributes {stable_mosaic.version = 11 : i64} {
  func.func @_noise_snr_kernel(%arg0: i32, %arg1: memref<1xf32, #tpu.memory_space<smem>>, %arg2: memref<2x64x64xf32, #tpu.memory_space<vmem>>, %arg3: memref<2x64x64xf32, #tpu.memory_space<vmem>>, %arg4: memref<64x32xf32, #tpu.memory_space<vmem>>, %arg5: memref<2x64x64xf32, #tpu.memory_space<vmem>>, %arg6: memref<2x1x2xf32, #tpu.memory_space<vmem>>) attributes {dimension_semantics = [#tpu.dimension_semantics<parallel>], iteration_bounds = array<i64: 1>, scalar_prefetch = 0 : i64, scratch_operands = 0 : i64, tpu.core_type = #tpu.core_type<tc>, window_params = [{transform_indices = @transform_0, window_bounds = array<i64: 1>}, {transform_indices = @transform_1, window_bounds = array<i64: 2, 64, 64>}, {transform_indices = @transform_2, window_bounds = array<i64: 2, 64, 64>}, {pipeline_mode = #tpu.pipeline_mode<synchronous>, transform_indices = @transform_3, window_bounds = array<i64: 64, 32>}, {transform_indices = @transform_4, window_bounds = array<i64: 2, 64, 64>}, {transform_indices = @transform_5, window_bounds = array<i64: 2, 1, 2>}]} {
    %c0 = arith.constant 0 : index
    %c0_0 = arith.constant 0 : index
    %c0_1 = arith.constant 0 : index
    %0 = vector.load %arg2[%c0, %c0_0, %c0_1] : memref<2x64x64xf32, #tpu.memory_space<vmem>>, vector<2x64x64xf32>
    %c0_2 = arith.constant 0 : index
    %c0_3 = arith.constant 0 : index
    %c0_4 = arith.constant 0 : index
    %1 = vector.load %arg3[%c0_2, %c0_3, %c0_4] : memref<2x64x64xf32, #tpu.memory_space<vmem>>, vector<2x64x64xf32>
    %c0_5 = arith.constant 0 : index
    %2 = memref.load %arg1[%c0_5] : memref<1xf32, #tpu.memory_space<smem>>
    %3 = vector.broadcast %2 : f32 to vector<2x64x64xf32>
    %4 = arith.mulf %1, %3 : vector<2x64x64xf32>
    %5 = arith.addf %0, %4 : vector<2x64x64xf32>
    %c0_6 = arith.constant 0 : index
    %c0_7 = arith.constant 0 : index
    %c0_8 = arith.constant 0 : index
    %6 = vector.load %arg5[%c0_6, %c0_7, %c0_8] : memref<2x64x64xf32, #tpu.memory_space<vmem>>, vector<2x64x64xf32>
    tpu.vector_store %arg5[%c0_6, %c0_7, %c0_8], %5 {strides = array<i32>} : memref<2x64x64xf32, #tpu.memory_space<vmem>>, vector<2x64x64xf32>,
    %c0_9 = arith.constant 0 : index
    %c0_10 = arith.constant 0 : index
    %7 = vector.load %arg4[%c0_9, %c0_10] : memref<64x32xf32, #tpu.memory_space<vmem>>, vector<64x32xf32>
    %8 = vector.shape_cast %0 : vector<2x64x64xf32> to vector<128x64xf32>
    %cst = arith.constant dense<0.000000e+00> : vector<128x32xf32>
    %9 = tpu.matmul %8, %7, %cst {dimension_numbers = #tpu.dot_dimension_numbers<[1], [0], [0], [1], [0, 0, 1, 1], [], []>} : vector<128x64xf32>, vector<64x32xf32>, vector<128x32xf32> -> vector<128x32xf32>
    %10 = vector.shape_cast %1 : vector<2x64x64xf32> to vector<128x64xf32>
    %cst_11 = arith.constant dense<0.000000e+00> : vector<128x32xf32>
    %11 = tpu.matmul %10, %7, %cst_11 {dimension_numbers = #tpu.dot_dimension_numbers<[1], [0], [0], [1], [0, 0, 1, 1], [], []>} : vector<128x64xf32>, vector<64x32xf32>, vector<128x32xf32> -> vector<128x32xf32>
    %12 = vector.shape_cast %9 : vector<128x32xf32> to vector<64x2x32xf32>
    %cst_12 = arith.constant dense<0.000000e+00> : vector<64x32xf32>
    %13 = vector.multi_reduction <add>, %12, %cst_12 [1] : vector<64x2x32xf32> to vector<64x32xf32>
    %cst_13 = arith.constant 5.000000e-01 : f32
    %14 = vector.broadcast %cst_13 : f32 to vector<64x32xf32>
    %15 = arith.mulf %13, %14 : vector<64x32xf32>
    %16 = vector.shape_cast %11 : vector<128x32xf32> to vector<64x2x32xf32>
    %cst_14 = arith.constant dense<0.000000e+00> : vector<64x32xf32>
    %17 = vector.multi_reduction <add>, %16, %cst_14 [1] : vector<64x2x32xf32> to vector<64x32xf32>
    %cst_15 = arith.constant 5.000000e-01 : f32
    %18 = vector.broadcast %cst_15 : f32 to vector<64x32xf32>
    %19 = arith.mulf %17, %18 : vector<64x32xf32>
    %20 = vector.shape_cast %15 : vector<64x32xf32> to vector<2x32x32xf32>
    %21 = vector.shape_cast %19 : vector<64x32xf32> to vector<2x32x32xf32>
    %22 = arith.mulf %20, %20 : vector<2x32x32xf32>
    %cst_16 = arith.constant dense<0.000000e+00> : vector<2x32xf32>
    %23 = vector.multi_reduction <add>, %22, %cst_16 [2] : vector<2x32x32xf32> to vector<2x32xf32>
    %24 = vector.shape_cast %23 : vector<2x32xf32> to vector<2x32x1xf32>
    %cst_17 = arith.constant dense<0.000000e+00> : vector<2x1xf32>
    %25 = vector.multi_reduction <add>, %24, %cst_17 [1] : vector<2x32x1xf32> to vector<2x1xf32>
    %26 = vector.shape_cast %25 : vector<2x1xf32> to vector<2x1x1xf32>
    %27 = arith.mulf %21, %21 : vector<2x32x32xf32>
    %cst_18 = arith.constant dense<0.000000e+00> : vector<2x32xf32>
    %28 = vector.multi_reduction <add>, %27, %cst_18 [2] : vector<2x32x32xf32> to vector<2x32xf32>
    %29 = vector.shape_cast %28 : vector<2x32xf32> to vector<2x32x1xf32>
    %cst_19 = arith.constant dense<0.000000e+00> : vector<2x1xf32>
    %30 = vector.multi_reduction <add>, %29, %cst_19 [1] : vector<2x32x1xf32> to vector<2x1xf32>
    %31 = vector.shape_cast %30 : vector<2x1xf32> to vector<2x1x1xf32>
    %32 = tpu.concatenate %26, %31 in 2 : vector<2x1x1xf32>, vector<2x1x1xf32> -> vector<2x1x2xf32>
    %c0_20 = arith.constant 0 : index
    %c0_21 = arith.constant 0 : index
    %c0_22 = arith.constant 0 : index
    %33 = vector.load %arg6[%c0_20, %c0_21, %c0_22] : memref<2x1x2xf32, #tpu.memory_space<vmem>>, vector<2x1x2xf32>
    tpu.vector_store %arg6[%c0_20, %c0_21, %c0_22], %32 {strides = array<i32>} : memref<2x1x2xf32, #tpu.memory_space<vmem>>, vector<2x1x2xf32>,
    return
  }
  func.func @transform_0(%arg0: i32) -> i32 {
    %c0_i32 = arith.constant 0 : i32
    %c0_i32_0 = arith.constant 0 : i32
    return %c0_i32 : i32
  }
  func.func @transform_1(%arg0: i32) -> (i32, i32, i32) {
    %c0_i32 = arith.constant 0 : i32
    %c0_i32_0 = arith.constant 0 : i32
    %c0_i32_1 = arith.constant 0 : i32
    return %arg0, %c0_i32, %c0_i32_0 : i32, i32, i32
  }
  func.func @transform_2(%arg0: i32) -> (i32, i32, i32) {
    %c0_i32 = arith.constant 0 : i32
    %c0_i32_0 = arith.constant 0 : i32
    %c0_i32_1 = arith.constant 0 : i32
    return %arg0, %c0_i32, %c0_i32_0 : i32, i32, i32
  }
  func.func @transform_3(%arg0: i32) -> (i32, i32) {
    %c0_i32 = arith.constant 0 : i32
    %c0_i32_0 = arith.constant 0 : i32
    %c0_i32_1 = arith.constant 0 : i32
    return %c0_i32, %c0_i32_0 : i32, i32
  }
  func.func @transform_4(%arg0: i32) -> (i32, i32, i32) {
    %c0_i32 = arith.constant 0 : i32
    %c0_i32_0 = arith.constant 0 : i32
    %c0_i32_1 = arith.constant 0 : i32
    return %arg0, %c0_i32, %c0_i32_0 : i32, i32, i32
  }
  func.func @transform_5(%arg0: i32) -> (i32, i32, i32) {
    %c0_i32 = arith.constant 0 : i32
    %c0_i32_0 = arith.constant 0 : i32
    %c0_i32_1 = arith.constant 0 : i32
    return %arg0, %c0_i32, %c0_i32_0 : i32, i32, i32
  }
}

</mosaic_0001>

<llo_original>
// kernel: noise_forward_pallas.1
$region0: #{noise_forward_pallas.1}
  #allocation0 [shape = 'u32[]', space=smem, size = 0x4, offset = 0x4, fixed_abs, tag = 'smem constant byte address 0x4 - core index']
  #allocation1 [shape = 'u32[72,128]{1,0:T(1,128)}', space=vmem, size = 0x9000, scoped, tag = 'internal scratch']
  #allocation2 [shape = 'f32[1]{0:T(128)S(6)}', space=smem, size = 0x200, scoped, tag = 'scoped memory for noise_forward_pallas.1']
  %s0 = inlined_call_operand.<no memory space> [shape: f32[1], index: 0, kind: input, shape index: {}]
  %s1 = inlined_call_operand.vmem [shape: f32[2,64,64], index: 1, kind: input, shape index: {}]
  %s2 = inlined_call_operand.hbm [shape: f32[2,64,64], index: 2, kind: input, shape index: {}]
  %s3 = inlined_call_operand.vmem [shape: f32[64,32], index: 3, kind: input, shape index: {}]
  %s4 = inlined_call_operand.hbm [shape: f32[2,64,64], index: 4, kind: output, shape index: {0}]
  %s5 = inlined_call_operand.vmem [shape: f32[2,1,2], index: 5, kind: output, shape index: {1}]
  %6 = xla_tuple %s4, %s5
  %s7 = sld [smem:[#allocation0]]
  $region38: #{noise_forward_pallas.1} parent=0
    _
  %s9 = ssub.s32 1, %s7
  %s10 = scalar_select 0, %s9, %s7
  %11 = sst [smem:[#allocation2]] %s0
  $region1: #{noise_forward_pallas.1} parent=0
    #allocation3 [shape = 'u8[65536]{0}', space=vmem, size = 0x10000, scoped, tag = 'input window, operand 2, single buffered']
    #allocation4 [shape = 's32[1]{0}', space=sflag, size = 0x4, scoped, tag = 'scoped memory for noise_forward_pallas.1']
    #allocation5 [shape = 's32[1]{0}', space=sflag, size = 0x4, scoped, tag = 'scoped memory for noise_forward_pallas.1']
    #allocation6 [shape = 'u8[65536]{0}', space=vmem, size = 0x10000, scoped, tag = 'output window, operand 0, single buffered']
    %12 = vsyncpa [#allocation4], 0
    %13 = vsyncpa [#allocation5], 0
    // Predicated region
    $region2: #{noise_forward_pallas.1} parent=1 // pred_check
      _
    $region3: #{noise_forward_pallas.1} parent=1 // pred_check_branch
      %15 = sbr.rel (0) target = $region5
    $region4: #{noise_forward_pallas.1} parent=1 // pred_region
      _
    $region5: #{noise_forward_pallas.1} parent=1 // pred_fallthru
      _
    // Predicated region
    $region6: #{noise_forward_pallas.1} parent=1 // pred_check
      _
    $region7: #{noise_forward_pallas.1} parent=1 // pred_check_branch
      %17 = sbr.rel (0) target = $region9
    $region8: #{noise_forward_pallas.1} parent=1 // pred_region
      _
    $region9: #{noise_forward_pallas.1} parent=1 // pred_fallthru
      _
    // Predicated region
    $region10: #{noise_forward_pallas.1} parent=1 // pred_check
      _
    $region11: #{noise_forward_pallas.1} parent=1 // pred_check_branch
      %19 = sbr.rel (0) target = $region13
    $region12: #{noise_forward_pallas.1} parent=1 // pred_region
      %21 = vsyncadd [#allocation4], 0
      %s22 = sshll.u32 %s2, 4
      %s23 = int_to_ptr.hbm [resolvable:$true] %s22
      %s24 = sshll.u32 [#allocation3], 4
      %s25 = int_to_ptr.vmem [resolvable:$true] %s24
      %30 = dma.hbm_to_vmem [thread:$0]  %s23, 2048, %s25, [#allocation4], 128, 128, 8
    $region13: #{noise_forward_pallas.1} parent=1 // pred_fallthru
      _
    // Predicated region
    $region14: #{noise_forward_pallas.1} parent=1 // pred_check
      _
    $region15: #{noise_forward_pallas.1} parent=1 // pred_check_branch
      %32 = sbr.rel (0) target = $region17
    $region16: #{noise_forward_pallas.1} parent=1 // pred_region
      _
    $region17: #{noise_forward_pallas.1} parent=1 // pred_fallthru
      _
    // Predicated region
    $region18: #{noise_forward_pallas.1} parent=1 // pred_check
      _
    $region19: #{noise_forward_pallas.1} parent=1 // pred_check_branch
      %34 = sbr.rel (0) target = $region21
    $region20: #{noise_forward_pallas.1} parent=1 // pred_region
      %36 = dma.done [#allocation4], 2048
    $region21: #{noise_forward_pallas.1} parent=1 // pred_fallthru
      _
    %v37 = vld [vmem:[%s1] sm:$0xff]
    %v38 = vld [vmem:[%s1 + $0x8] sm:$0xff]
    %v39 = vld [vmem:[%s1 + $0x10] sm:$0xff]
    %v40 = vld [vmem:[%s1 + $0x18] sm:$0xff]
    %v41 = vld [vmem:[%s1 + $0x20] sm:$0xff]
    %v42 = vld [vmem:[%s1 + $0x28] sm:$0xff]
    %v43 = vld [vmem:[%s1 + $0x30] sm:$0xff]
    %v44 = vld [vmem:[%s1 + $0x38] sm:$0xff]
    %v45 = vld [vmem:[%s1 + $0x40] sm:$0xff]
    %v46 = vld [vmem:[%s1 + $0x48] sm:$0xff]
    %v47 = vld [vmem:[%s1 + $0x50] sm:$0xff]
    %v48 = vld [vmem:[%s1 + $0x58] sm:$0xff]
    %v49 = vld [vmem:[%s1 + $0x60] sm:$0xff]
    %v50 = vld [vmem:[%s1 + $0x68] sm:$0xff]
    %v51 = vld [vmem:[%s1 + $0x70] sm:$0xff]
    %v52 = vld [vmem:[%s1 + $0x78] sm:$0xff]
    %v53 = vld [vmem:[#allocation3] sm:$0xff]
    %v54 = vld [vmem:[#allocation3 + $0x8] sm:$0xff]
    %v55 = vld [vmem:[#allocation3 + $0x10] sm:$0xff]
    %v56 = vld [vmem:[#allocation3 + $0x18] sm:$0xff]
    %v57 = vld [vmem:[#allocation3 + $0x20] sm:$0xff]
    %v58 = vld [vmem:[#allocation3 + $0x28] sm:$0xff]
    %v59 = vld [vmem:[#allocation3 + $0x30] sm:$0xff]
    %v60 = vld [vmem:[#allocation3 + $0x38] sm:$0xff]
    %v61 = vld [vmem:[#allocation3 + $0x40] sm:$0xff]
    %v62 = vld [vmem:[#allocation3 + $0x48] sm:$0xff]
    %v63 = vld [vmem:[#allocation3 + $0x50] sm:$0xff]
    %v64 = vld [vmem:[#allocation3 + $0x58] sm:$0xff]
    %v65 = vld [vmem:[#allocation3 + $0x60] sm:$0xff]
    %v66 = vld [vmem:[#allocation3 + $0x68] sm:$0xff]
    %v67 = vld [vmem:[#allocation3 + $0x70] sm:$0xff]
    %v68 = vld [vmem:[#allocation3 + $0x78] sm:$0xff]
    %s69 = sld [smem:[#allocation2]]
    %v70 = vstv %s69
    %v71 = vmul.f32 %v53, %v70
    %v72 = vmul.f32 %v54, %v70
    %v73 = vmul.f32 %v55, %v70
    %v74 = vmul.f32 %v56, %v70
    %v75 = vmul.f32 %v57, %v70
    %v76 = vmul.f32 %v58, %v70
    %v77 = vmul.f32 %v59, %v70
    %v78 = vmul.f32 %v60, %v70
    %v79 = vmul.f32 %v61, %v70
    %v80 = vmul.f32 %v62, %v70
    %v81 = vmul.f32 %v63, %v70
    %v82 = vmul.f32 %v64, %v70
    %v83 = vmul.f32 %v65, %v70
    %v84 = vmul.f32 %v66, %v70
    %v85 = vmul.f32 %v67, %v70
    %v86 = vmul.f32 %v68, %v70
    %v87 = vadd.f32 %v37, %v71
    %v88 = vadd.f32 %v38, %v72
    %v89 = vadd.f32 %v39, %v73
    %v90 = vadd.f32 %v40, %v74
    %v91 = vadd.f32 %v41, %v75
    %v92 = vadd.f32 %v42, %v76
    %v93 = vadd.f32 %v43, %v77
    %v94 = vadd.f32 %v44, %v78
    %v95 = vadd.f32 %v45, %v79
    %v96 = vadd.f32 %v46, %v80
    %v97 = vadd.f32 %v47, %v81
    %v98 = vadd.f32 %v48, %v82
    %v99 = vadd.f32 %v49, %v83
    %v100 = vadd.f32 %v50, %v84
    %v101 = vadd.f32 %v51, %v85
    %v102 = vadd.f32 %v52, %v86
    %vm103 = vcmask 523264
    %104 = vst.msk [vmem:[#allocation6] sm:$0xff] %vm103, %v87
    %105 = vst.msk [vmem:[#allocation6 + $0x8] sm:$0xff] %vm103, %v88
    %106 = vst.msk [vmem:[#allocation6 + $0x10] sm:$0xff] %vm103, %v89
    %107 = vst.msk [vmem:[#allocation6 + $0x18] sm:$0xff] %vm103, %v90
    %108 = vst.msk [vmem:[#allocation6 + $0x20] sm:$0xff] %vm103, %v91
    %109 = vst.msk [vmem:[#allocation6 + $0x28] sm:$0xff] %vm103, %v92
    %110 = vst.msk [vmem:[#allocation6 + $0x30] sm:$0xff] %vm103, %v93
    %111 = vst.msk [vmem:[#allocation6 + $0x38] sm:$0xff] %vm103, %v94
    %112 = vst.msk [vmem:[#allocation6 + $0x40] sm:$0xff] %vm103, %v95
    %113 = vst.msk [vmem:[#allocation6 + $0x48] sm:$0xff] %vm103, %v96
    %114 = vst.msk [vmem:[#allocation6 + $0x50] sm:$0xff] %vm103, %v97
    %115 = vst.msk [vmem:[#allocation6 + $0x58] sm:$0xff] %vm103, %v98
    %116 = vst.msk [vmem:[#allocation6 + $0x60] sm:$0xff] %vm103, %v99
    %117 = vst.msk [vmem:[#allocation6 + $0x68] sm:$0xff] %vm103, %v100
    %118 = vst.msk [vmem:[#allocation6 + $0x70] sm:$0xff] %vm103, %v101
    %119 = vst.msk [vmem:[#allocation6 + $0x78] sm:$0xff] %vm103, %v102
    %v120 = vld [vmem:[%s3] sm:$0xff]
    %v121 = vld [vmem:[%s3 + $0x8] sm:$0xff]
    %v122 = vld [vmem:[%s3 + $0x10] sm:$0xff]
    %v123 = vld [vmem:[%s3 + $0x18] sm:$0xff]
    %v124 = vld [vmem:[%s3 + $0x20] sm:$0xff]
    %v125 = vld [vmem:[%s3 + $0x28] sm:$0xff]
    %v126 = vld [vmem:[%s3 + $0x30] sm:$0xff]
    %v127 = vld [vmem:[%s3 + $0x38] sm:$0xff]
    %v129 = vsel %vm103, %v37, 0
    %v132 = vsel %vm103, %v38, 0
    %v135 = vsel %vm103, %v39, 0
    %v138 = vsel %vm103, %v40, 0
    %v141 = vsel %vm103, %v41, 0
    %v144 = vsel %vm103, %v42, 0
    %v147 = vsel %vm103, %v43, 0
    %v150 = vsel %vm103, %v44, 0
    %v153 = vsel %vm103, %v45, 0
    %v156 = vsel %vm103, %v46, 0
    %v159 = vsel %vm103, %v47, 0
    %v162 = vsel %vm103, %v48, 0
    %v165 = vsel %vm103, %v49, 0
    %v168 = vsel %vm103, %v50, 0
    %v171 = vsel %vm103, %v51, 0
    %v174 = vsel %vm103, %v52, 0
    %176 = vmatpush.msra.mxu0 0.0
    %177 = vmatpush.msra.mxu0 0.0
    %178 = vmatpush.msra.mxu0 0.0
    %179 = vmatpush.msra.mxu0 0.0
    %180 = vmatpush.msra.mxu0 0.0
    %181 = vmatpush.msra.mxu0 0.0
    %182 = vmatpush.msra.mxu0 0.0
    %183 = vmatpush.msra.mxu0 0.0
    %184 = vmatpush.msra.mxu0 %v127
    %185 = vmatpush.msra.mxu0 %v126
    %186 = vmatpush.msra.mxu0 %v125
    %187 = vmatpush.msra.mxu0 %v124
    %188 = vmatpush.msra.mxu0 %v123
    %189 = vmatpush.msra.mxu0 %v122
    %190 = vmatpush.msra.mxu0 %v121
    %191 = vmatpush.msra.mxu0 %v120
    %192 = vmatmul.f32.gmra.mxu0 %v129
    %v193 = vpop.f32.mrf.mxu0
    %v194 = vadd.f32 0.0, %v193
    %195 = vmatmul.f32.gmra.mxu0 %v132
    %v196 = vpop.f32.mrf.mxu0
    %v197 = vadd.f32 0.0, %v196
    %198 = vmatmul.f32.gmra.mxu0 %v135
    %v199 = vpop.f32.mrf.mxu0
    %v200 = vadd.f32 0.0, %v199
    %201 = vmatmul.f32.gmra.mxu0 %v138
    %v202 = vpop.f32.mrf.mxu0
    %v203 = vadd.f32 0.0, %v202
    %204 = vmatmul.f32.gmra.mxu0 %v141
    %v205 = vpop.f32.mrf.mxu0
    %v206 = vadd.f32 0.0, %v205
    %207 = vmatmul.f32.gmra.mxu0 %v144
    %v208 = vpop.f32.mrf.mxu0
    %v209 = vadd.f32 0.0, %v208
    %210 = vmatmul.f32.gmra.mxu0 %v147
    %v211 = vpop.f32.mrf.mxu0
    %v212 = vadd.f32 0.0, %v211
    %213 = vmatmul.f32.gmra.mxu0 %v150
    %v214 = vpop.f32.mrf.mxu0
    %v215 = vadd.f32 0.0, %v214
    %216 = vmatmul.f32.gmra.mxu0 %v153
    %v217 = vpop.f32.mrf.mxu0
    %v218 = vadd.f32 0.0, %v217
    %219 = vmatmul.f32.gmra.mxu0 %v156
    %v220 = vpop.f32.mrf.mxu0
    %v221 = vadd.f32 0.0, %v220
    %222 = vmatmul.f32.gmra.mxu0 %v159
    %v223 = vpop.f32.mrf.mxu0
    %v224 = vadd.f32 0.0, %v223
    %225 = vmatmul.f32.gmra.mxu0 %v162
    %v226 = vpop.f32.mrf.mxu0
    %v227 = vadd.f32 0.0, %v226
    %228 = vmatmul.f32.gmra.mxu0 %v165
    %v229 = vpop.f32.mrf.mxu0
    %v230 = vadd.f32 0.0, %v229
    %231 = vmatmul.f32.gmra.mxu0 %v168
    %v232 = vpop.f32.mrf.mxu0
    %v233 = vadd.f32 0.0, %v232
    %234 = vmatmul.f32.gmra.mxu0 %v171
    %v235 = vpop.f32.mrf.mxu0
    %v236 = vadd.f32 0.0, %v235
    %237 = vmatmul.f32.gmra.mxu0 %v174
    %v238 = vpop.f32.mrf.mxu0
    %v239 = vadd.f32 0.0, %v238
    %240 = vdwg.mxu0
    %v242 = vsel %vm103, %v53, 0
    %v245 = vsel %vm103, %v54, 0
    %v248 = vsel %vm103, %v55, 0
    %v251 = vsel %vm103, %v56, 0
    %v254 = vsel %vm103, %v57, 0
    %v257 = vsel %vm103, %v58, 0
    %v260 = vsel %vm103, %v59, 0
    %v263 = vsel %vm103, %v60, 0
    %v266 = vsel %vm103, %v61, 0
    %v269 = vsel %vm103, %v62, 0
    %v272 = vsel %vm103, %v63, 0
    %v275 = vsel %vm103, %v64, 0
    %v278 = vsel %vm103, %v65, 0
    %v281 = vsel %vm103, %v66, 0
    %v284 = vsel %vm103, %v67, 0
    %v287 = vsel %vm103, %v68, 0
    %289 = vmatpush.msra.mxu0 0.0
    %290 = vmatpush.msra.mxu0 0.0
    %291 = vmatpush.msra.mxu0 0.0
    %292 = vmatpush.msra.mxu0 0.0
    %293 = vmatpush.msra.mxu0 0.0
    %294 = vmatpush.msra.mxu0 0.0
    %295 = vmatpush.msra.mxu0 0.0
    %296 = vmatpush.msra.mxu0 0.0
    %297 = vmatpush.msra.mxu0 %v127
    %298 = vmatpush.msra.mxu0 %v126
    %299 = vmatpush.msra.mxu0 %v125
    %300 = vmatpush.msra.mxu0 %v124
    %301 = vmatpush.msra.mxu0 %v123
    %302 = vmatpush.msra.mxu0 %v122
    %303 = vmatpush.msra.mxu0 %v121
    %304 = vmatpush.msra.mxu0 %v120
    %305 = vmatmul.f32.gmra.mxu0 %v242
    %v306 = vpop.f32.mrf.mxu0
    %v307 = vadd.f32 0.0, %v306
    %308 = vmatmul.f32.gmra.mxu0 %v245
    %v309 = vpop.f32.mrf.mxu0
    %v310 = vadd.f32 0.0, %v309
    %311 = vmatmul.f32.gmra.mxu0 %v248
    %v312 = vpop.f32.mrf.mxu0
    %v313 = vadd.f32 0.0, %v312
    %314 = vmatmul.f32.gmra.mxu0 %v251
    %v315 = vpop.f32.mrf.mxu0
    %v316 = vadd.f32 0.0, %v315
    %317 = vmatmul.f32.gmra.mxu0 %v254
    %v318 = vpop.f32.mrf.mxu0
    %v319 = vadd.f32 0.0, %v318
    %320 = vmatmul.f32.gmra.mxu0 %v257
    %v321 = vpop.f32.mrf.mxu0
    %v322 = vadd.f32 0.0, %v321
    %323 = vmatmul.f32.gmra.mxu0 %v260
    %v324 = vpop.f32.mrf.mxu0
    %v325 = vadd.f32 0.0, %v324
    %326 = vmatmul.f32.gmra.mxu0 %v263
    %v327 = vpop.f32.mrf.mxu0
    %v328 = vadd.f32 0.0, %v327
    %329 = vmatmul.f32.gmra.mxu0 %v266
    %v330 = vpop.f32.mrf.mxu0
    %v331 = vadd.f32 0.0, %v330
    %332 = vmatmul.f32.gmra.mxu0 %v269
    %v333 = vpop.f32.mrf.mxu0
    %v334 = vadd.f32 0.0, %v333
    %335 = vmatmul.f32.gmra.mxu0 %v272
    %v336 = vpop.f32.mrf.mxu0
    %v337 = vadd.f32 0.0, %v336
    %338 = vmatmul.f32.gmra.mxu0 %v275
    %v339 = vpop.f32.mrf.mxu0
    %v340 = vadd.f32 0.0, %v339
    %341 = vmatmul.f32.gmra.mxu0 %v278
    %v342 = vpop.f32.mrf.mxu0
    %v343 = vadd.f32 0.0, %v342
    %344 = vmatmul.f32.gmra.mxu0 %v281
    %v345 = vpop.f32.mrf.mxu0
    %v346 = vadd.f32 0.0, %v345
    %347 = vmatmul.f32.gmra.mxu0 %v284
    %v348 = vpop.f32.mrf.mxu0
    %v349 = vadd.f32 0.0, %v348
    %350 = vmatmul.f32.gmra.mxu0 %v287
    %v351 = vpop.f32.mrf.mxu0
    %v352 = vadd.f32 0.0, %v351
    %353 = vdwg.mxu0
    %v370 = vrot.slane %v194, 2
    %v371 = vrot.slane %v194, 4
    %v372 = vrot.slane %v194, 6
    %v373 = vrot.slane %v197, 2
    %v374 = vrot.slane %v197, 4
    %v375 = vrot.slane %v197, 6
    %v376 = vrot.slane %v200, 2
    %v377 = vrot.slane %v200, 4
    %v378 = vrot.slane %v200, 6
    %v379 = vrot.slane %v203, 2
    %v380 = vrot.slane %v203, 4
    %v381 = vrot.slane %v203, 6
    %v382 = vrot.slane %v206, 2
    %v383 = vrot.slane %v206, 4
    %v384 = vrot.slane %v206, 6
    %v385 = vrot.slane %v209, 2
    %v386 = vrot.slane %v209, 4
    %v387 = vrot.slane %v209, 6
    %v388 = vrot.slane %v212, 2
    %v389 = vrot.slane %v212, 4
    %v390 = vrot.slane %v212, 6
    %v391 = vrot.slane %v215, 2
    %v392 = vrot.slane %v215, 4
    %v393 = vrot.slane %v215, 6
    %v394 = vrot.slane %v218, 2
    %v395 = vrot.slane %v218, 4
    %v396 = vrot.slane %v218, 6
    %v397 = vrot.slane %v221, 2
    %v398 = vrot.slane %v221, 4
    %v399 = vrot.slane %v221, 6
    %v400 = vrot.slane %v224, 2
    %v401 = vrot.slane %v224, 4
    %v402 = vrot.slane %v224, 6
    %v403 = vrot.slane %v227, 2
    %v404 = vrot.slane %v227, 4
    %v405 = vrot.slane %v227, 6
    %v406 = vrot.slane %v230, 2
    %v407 = vrot.slane %v230, 4
    %v408 = vrot.slane %v230, 6
    %v409 = vrot.slane %v233, 2
    %v410 = vrot.slane %v233, 4
    %v411 = vrot.slane %v233, 6
    %v412 = vrot.slane %v236, 2
    %v413 = vrot.slane %v236, 4
    %v414 = vrot.slane %v236, 6
    %v415 = vrot.slane %v239, 2
    %v416 = vrot.slane %v239, 4
    %v417 = vrot.slane %v239, 6
    %vm466 = vcmask 254976
    %v467 = vsel %vm466, %v194, 0.0
    %v468 = vrot.slane %v467, 4
    %v469 = vadd.f32 %v467, %v468
    %v470 = vrot.slane %v469, 2
    %v471 = vadd.f32 %v469, %v470
    %v472 = vrot.slane %v471, 1
    %v473 = vadd.f32 %v471, %v472
    %v474 = vsel %vm466, %v370, 0.0
    %v475 = vrot.slane %v474, 4
    %v476 = vadd.f32 %v474, %v475
    %v477 = vrot.slane %v476, 2
    %v478 = vadd.f32 %v476, %v477
    %v479 = vrot.slane %v478, 1
    %v480 = vadd.f32 %v478, %v479
    %v481 = vsel %vm466, %v371, 0.0
    %v482 = vrot.slane %v481, 4
    %v483 = vadd.f32 %v481, %v482
    %v484 = vrot.slane %v483, 2
    %v485 = vadd.f32 %v483, %v484
    %v486 = vrot.slane %v485, 1
    %v487 = vadd.f32 %v485, %v486
    %v488 = vsel %vm466, %v372, 0.0
    %v489 = vrot.slane %v488, 4
    %v490 = vadd.f32 %v488, %v489
    %v491 = vrot.slane %v490, 2
    %v492 = vadd.f32 %v490, %v491
    %v493 = vrot.slane %v492, 1
    %v494 = vadd.f32 %v492, %v493
    %v495 = vsel %vm466, %v197, 0.0
    %v496 = vrot.slane %v495, 4
    %v497 = vadd.f32 %v495, %v496
    %v498 = vrot.slane %v497, 2
    %v499 = vadd.f32 %v497, %v498
    %v500 = vrot.slane %v499, 1
    %v501 = vadd.f32 %v499, %v500
    %v502 = vsel %vm466, %v373, 0.0
    %v503 = vrot.slane %v502, 4
    %v504 = vadd.f32 %v502, %v503
    %v505 = vrot.slane %v504, 2
    %v506 = vadd.f32 %v504, %v505
    %v507 = vrot.slane %v506, 1
    %v508 = vadd.f32 %v506, %v507
    %v509 = vsel %vm466, %v374, 0.0
    %v510 = vrot.slane %v509, 4
    %v511 = vadd.f32 %v509, %v510
    %v512 = vrot.slane %v511, 2
    %v513 = vadd.f32 %v511, %v512
    %v514 = vrot.slane %v513, 1
    %v515 = vadd.f32 %v513, %v514
    %v516 = vsel %vm466, %v375, 0.0
    %v517 = vrot.slane %v516, 4
    %v518 = vadd.f32 %v516, %v517
    %v519 = vrot.slane %v518, 2
    %v520 = vadd.f32 %v518, %v519
    %v521 = vrot.slane %v520, 1
    %v522 = vadd.f32 %v520, %v521
    %v523 = vsel %vm466, %v200, 0.0
    %v524 = vrot.slane %v523, 4
    %v525 = vadd.f32 %v523, %v524
    %v526 = vrot.slane %v525, 2
    %v527 = vadd.f32 %v525, %v526
    %v528 = vrot.slane %v527, 1
    %v529 = vadd.f32 %v527, %v528
    %v530 = vsel %vm466, %v376, 0.0
    %v531 = vrot.slane %v530, 4
    %v532 = vadd.f32 %v530, %v531
    %v533 = vrot.slane %v532, 2
    %v534 = vadd.f32 %v532, %v533
    %v535 = vrot.slane %v534, 1
    %v536 = vadd.f32 %v534, %v535
    %v537 = vsel %vm466, %v377, 0.0
    %v538 = vrot.slane %v537, 4
    %v539 = vadd.f32 %v537, %v538
    %v540 = vrot.slane %v539, 2
    %v541 = vadd.f32 %v539, %v540
    %v542 = vrot.slane %v541, 1
    %v543 = vadd.f32 %v541, %v542
    %v544 = vsel %vm466, %v378, 0.0
    %v545 = vrot.slane %v544, 4
    %v546 = vadd.f32 %v544, %v545
    %v547 = vrot.slane %v546, 2
    %v548 = vadd.f32 %v546, %v547
    %v549 = vrot.slane %v548, 1
    %v550 = vadd.f32 %v548, %v549
    %v551 = vsel %vm466, %v203, 0.0
    %v552 = vrot.slane %v551, 4
    %v553 = vadd.f32 %v551, %v552
    %v554 = vrot.slane %v553, 2
    %v555 = vadd.f32 %v553, %v554
    %v556 = vrot.slane %v555, 1
    %v557 = vadd.f32 %v555, %v556
    %v558 = vsel %vm466, %v379, 0.0
    %v559 = vrot.slane %v558, 4
    %v560 = vadd.f32 %v558, %v559
    %v561 = vrot.slane %v560, 2
    %v562 = vadd.f32 %v560, %v561
    %v563 = vrot.slane %v562, 1
    %v564 = vadd.f32 %v562, %v563
    %v565 = vsel %vm466, %v380, 0.0
    %v566 = vrot.slane %v565, 4
    %v567 = vadd.f32 %v565, %v566
    %v568 = vrot.slane %v567, 2
    %v569 = vadd.f32 %v567, %v568
    %v570 = vrot.slane %v569, 1
    %v571 = vadd.f32 %v569, %v570
    %v572 = vsel %vm466, %v381, 0.0
    %v573 = vrot.slane %v572, 4
    %v574 = vadd.f32 %v572, %v573
    %v575 = vrot.slane %v574, 2
    %v576 = vadd.f32 %v574, %v575
    %v577 = vrot.slane %v576, 1
    %v578 = vadd.f32 %v576, %v577
    %v579 = vsel %vm466, %v206, 0.0
    %v580 = vrot.slane %v579, 4
    %v581 = vadd.f32 %v579, %v580
    %v582 = vrot.slane %v581, 2
    %v583 = vadd.f32 %v581, %v582
    %v584 = vrot.slane %v583, 1
    %v585 = vadd.f32 %v583, %v584
    %v586 = vsel %vm466, %v382, 0.0
    %v587 = vrot.slane %v586, 4
    %v588 = vadd.f32 %v586, %v587
    %v589 = vrot.slane %v588, 2
    %v590 = vadd.f32 %v588, %v589
    %v591 = vrot.slane %v590, 1
    %v592 = vadd.f32 %v590, %v591
    %v593 = vsel %vm466, %v383, 0.0
    %v594 = vrot.slane %v593, 4
    %v595 = vadd.f32 %v593, %v594
    %v596 = vrot.slane %v595, 2
    %v597 = vadd.f32 %v595, %v596
    %v598 = vrot.slane %v597, 1
    %v599 = vadd.f32 %v597, %v598
    %v600 = vsel %vm466, %v384, 0.0
    %v601 = vrot.slane %v600, 4
    %v602 = vadd.f32 %v600, %v601
    %v603 = vrot.slane %v602, 2
    %v604 = vadd.f32 %v602, %v603
    %v605 = vrot.slane %v604, 1
    %v606 = vadd.f32 %v604, %v605
    %v607 = vsel %vm466, %v209, 0.0
    %v608 = vrot.slane %v607, 4
    %v609 = vadd.f32 %v607, %v608
    %v610 = vrot.slane %v609, 2
    %v611 = vadd.f32 %v609, %v610
    %v612 = vrot.slane %v611, 1
    %v613 = vadd.f32 %v611, %v612
    %v614 = vsel %vm466, %v385, 0.0
    %v615 = vrot.slane %v614, 4
    %v616 = vadd.f32 %v614, %v615
    %v617 = vrot.slane %v616, 2
    %v618 = vadd.f32 %v616, %v617
    %v619 = vrot.slane %v618, 1
    %v620 = vadd.f32 %v618, %v619
    %v621 = vsel %vm466, %v386, 0.0
    %v622 = vrot.slane %v621, 4
    %v623 = vadd.f32 %v621, %v622
    %v624 = vrot.slane %v623, 2
    %v625 = vadd.f32 %v623, %v624
    %v626 = vrot.slane %v625, 1
    %v627 = vadd.f32 %v625, %v626
    %v628 = vsel %vm466, %v387, 0.0
    %v629 = vrot.slane %v628, 4
    %v630 = vadd.f32 %v628, %v629
    %v631 = vrot.slane %v630, 2
    %v632 = vadd.f32 %v630, %v631
    %v633 = vrot.slane %v632, 1
    %v634 = vadd.f32 %v632, %v633
    %v635 = vsel %vm466, %v212, 0.0
    %v636 = vrot.slane %v635, 4
    %v637 = vadd.f32 %v635, %v636
    %v638 = vrot.slane %v637, 2
    %v639 = vadd.f32 %v637, %v638
    %v640 = vrot.slane %v639, 1
    %v641 = vadd.f32 %v639, %v640
    %v642 = vsel %vm466, %v388, 0.0
    %v643 = vrot.slane %v642, 4
    %v644 = vadd.f32 %v642, %v643
    %v645 = vrot.slane %v644, 2
    %v646 = vadd.f32 %v644, %v645
    %v647 = vrot.slane %v646, 1
    %v648 = vadd.f32 %v646, %v647
    %v649 = vsel %vm466, %v389, 0.0
    %v650 = vrot.slane %v649, 4
    %v651 = vadd.f32 %v649, %v650
    %v652 = vrot.slane %v651, 2
    %v653 = vadd.f32 %v651, %v652
    %v654 = vrot.slane %v653, 1
    %v655 = vadd.f32 %v653, %v654
    %v656 = vsel %vm466, %v390, 0.0
    %v657 = vrot.slane %v656, 4
    %v658 = vadd.f32 %v656, %v657
    %v659 = vrot.slane %v658, 2
    %v660 = vadd.f32 %v658, %v659
    %v661 = vrot.slane %v660, 1
    %v662 = vadd.f32 %v660, %v661
    %v663 = vsel %vm466, %v215, 0.0
    %v664 = vrot.slane %v663, 4
    %v665 = vadd.f32 %v663, %v664
    %v666 = vrot.slane %v665, 2
    %v667 = vadd.f32 %v665, %v666
    %v668 = vrot.slane %v667, 1
    %v669 = vadd.f32 %v667, %v668
    %v670 = vsel %vm466, %v391, 0.0
    %v671 = vrot.slane %v670, 4
    %v672 = vadd.f32 %v670, %v671
    %v673 = vrot.slane %v672, 2
    %v674 = vadd.f32 %v672, %v673
    %v675 = vrot.slane %v674, 1
    %v676 = vadd.f32 %v674, %v675
    %v677 = vsel %vm466, %v392, 0.0
    %v678 = vrot.slane %v677, 4
    %v679 = vadd.f32 %v677, %v678
    %v680 = vrot.slane %v679, 2
    %v681 = vadd.f32 %v679, %v680
    %v682 = vrot.slane %v681, 1
    %v683 = vadd.f32 %v681, %v682
    %v684 = vsel %vm466, %v393, 0.0
    %v685 = vrot.slane %v684, 4
    %v686 = vadd.f32 %v684, %v685
    %v687 = vrot.slane %v686, 2
    %v688 = vadd.f32 %v686, %v687
    %v689 = vrot.slane %v688, 1
    %v690 = vadd.f32 %v688, %v689
    %v691 = vsel %vm466, %v218, 0.0
    %v692 = vrot.slane %v691, 4
    %v693 = vadd.f32 %v691, %v692
    %v694 = vrot.slane %v693, 2
    %v695 = vadd.f32 %v693, %v694
    %v696 = vrot.slane %v695, 1
    %v697 = vadd.f32 %v695, %v696
    %v698 = vsel %vm466, %v394, 0.0
    %v699 = vrot.slane %v698, 4
    %v700 = vadd.f32 %v698, %v699
    %v701 = vrot.slane %v700, 2
    %v702 = vadd.f32 %v700, %v701
    %v703 = vrot.slane %v702, 1
    %v704 = vadd.f32 %v702, %v703
    %v705 = vsel %vm466, %v395, 0.0
    %v706 = vrot.slane %v705, 4
    %v707 = vadd.f32 %v705, %v706
    %v708 = vrot.slane %v707, 2
    %v709 = vadd.f32 %v707, %v708
    %v710 = vrot.slane %v709, 1
    %v711 = vadd.f32 %v709, %v710
    %v712 = vsel %vm466, %v396, 0.0
    %v713 = vrot.slane %v712, 4
    %v714 = vadd.f32 %v712, %v713
    %v715 = vrot.slane %v714, 2
    %v716 = vadd.f32 %v714, %v715
    %v717 = vrot.slane %v716, 1
    %v718 = vadd.f32 %v716, %v717
    %v719 = vsel %vm466, %v221, 0.0
    %v720 = vrot.slane %v719, 4
    %v721 = vadd.f32 %v719, %v720
    %v722 = vrot.slane %v721, 2
    %v723 = vadd.f32 %v721, %v722
    %v724 = vrot.slane %v723, 1
    %v725 = vadd.f32 %v723, %v724
    %v726 = vsel %vm466, %v397, 0.0
    %v727 = vrot.slane %v726, 4
    %v728 = vadd.f32 %v726, %v727
    %v729 = vrot.slane %v728, 2
    %v730 = vadd.f32 %v728, %v729
    %v731 = vrot.slane %v730, 1
    %v732 = vadd.f32 %v730, %v731
    %v733 = vsel %vm466, %v398, 0.0
    %v734 = vrot.slane %v733, 4
    %v735 = vadd.f32 %v733, %v734
    %v736 = vrot.slane %v735, 2
    %v737 = vadd.f32 %v735, %v736
    %v738 = vrot.slane %v737, 1
    %v739 = vadd.f32 %v737, %v738
    %v740 = vsel %vm466, %v399, 0.0
    %v741 = vrot.slane %v740, 4
    %v742 = vadd.f32 %v740, %v741
    %v743 = vrot.slane %v742, 2
    %v744 = vadd.f32 %v742, %v743
    %v745 = vrot.slane %v744, 1
    %v746 = vadd.f32 %v744, %v745
    %v747 = vsel %vm466, %v224, 0.0
    %v748 = vrot.slane %v747, 4
    %v749 = vadd.f32 %v747, %v748
    %v750 = vrot.slane %v749, 2
    %v751 = vadd.f32 %v749, %v750
    %v752 = vrot.slane %v751, 1
    %v753 = vadd.f32 %v751, %v752
    %v754 = vsel %vm466, %v400, 0.0
    %v755 = vrot.slane %v754, 4
    %v756 = vadd.f32 %v754, %v755
    %v757 = vrot.slane %v756, 2
    %v758 = vadd.f32 %v756, %v757
    %v759 = vrot.slane %v758, 1
    %v760 = vadd.f32 %v758, %v759
    %v761 = vsel %vm466, %v401, 0.0
    %v762 = vrot.slane %v761, 4
    %v763 = vadd.f32 %v761, %v762
    %v764 = vrot.slane %v763, 2
    %v765 = vadd.f32 %v763, %v764
    %v766 = vrot.slane %v765, 1
    %v767 = vadd.f32 %v765, %v766
    %v768 = vsel %vm466, %v402, 0.0
    %v769 = vrot.slane %v768, 4
    %v770 = vadd.f32 %v768, %v769
    %v771 = vrot.slane %v770, 2
    %v772 = vadd.f32 %v770, %v771
    %v773 = vrot.slane %v772, 1
    %v774 = vadd.f32 %v772, %v773
    %v775 = vsel %vm466, %v227, 0.0
    %v776 = vrot.slane %v775, 4
    %v777 = vadd.f32 %v775, %v776
    %v778 = vrot.slane %v777, 2
    %v779 = vadd.f32 %v777, %v778
    %v780 = vrot.slane %v779, 1
    %v781 = vadd.f32 %v779, %v780
    %v782 = vsel %vm466, %v403, 0.0
    %v783 = vrot.slane %v782, 4
    %v784 = vadd.f32 %v782, %v783
    %v785 = vrot.slane %v784, 2
    %v786 = vadd.f32 %v784, %v785
    %v787 = vrot.slane %v786, 1
    %v788 = vadd.f32 %v786, %v787
    %v789 = vsel %vm466, %v404, 0.0
    %v790 = vrot.slane %v789, 4
    %v791 = vadd.f32 %v789, %v790
    %v792 = vrot.slane %v791, 2
    %v793 = vadd.f32 %v791, %v792
    %v794 = vrot.slane %v793, 1
    %v795 = vadd.f32 %v793, %v794
    %v796 = vsel %vm466, %v405, 0.0
    %v797 = vrot.slane %v796, 4
    %v798 = vadd.f32 %v796, %v797
    %v799 = vrot.slane %v798, 2
    %v800 = vadd.f32 %v798, %v799
    %v801 = vrot.slane %v800, 1
    %v802 = vadd.f32 %v800, %v801
    %v803 = vsel %vm466, %v230, 0.0
    %v804 = vrot.slane %v803, 4
    %v805 = vadd.f32 %v803, %v804
    %v806 = vrot.slane %v805, 2
    %v807 = vadd.f32 %v805, %v806
    %v808 = vrot.slane %v807, 1
    %v809 = vadd.f32 %v807, %v808
    %v810 = vsel %vm466, %v406, 0.0
    %v811 = vrot.slane %v810, 4
    %v812 = vadd.f32 %v810, %v811
    %v813 = vrot.slane %v812, 2
    %v814 = vadd.f32 %v812, %v813
    %v815 = vrot.slane %v814, 1
    %v816 = vadd.f32 %v814, %v815
    %v817 = vsel %vm466, %v407, 0.0
    %v818 = vrot.slane %v817, 4
    %v819 = vadd.f32 %v817, %v818
    %v820 = vrot.slane %v819, 2
    %v821 = vadd.f32 %v819, %v820
    %v822 = vrot.slane %v821, 1
    %v823 = vadd.f32 %v821, %v822
    %v824 = vsel %vm466, %v408, 0.0
    %v825 = vrot.slane %v824, 4
    %v826 = vadd.f32 %v824, %v825
    %v827 = vrot.slane %v826, 2
    %v828 = vadd.f32 %v826, %v827
    %v829 = vrot.slane %v828, 1
    %v830 = vadd.f32 %v828, %v829
    %v831 = vsel %vm466, %v233, 0.0
    %v832 = vrot.slane %v831, 4
    %v833 = vadd.f32 %v831, %v832
    %v834 = vrot.slane %v833, 2
    %v835 = vadd.f32 %v833, %v834
    %v836 = vrot.slane %v835, 1
    %v837 = vadd.f32 %v835, %v836
    %v838 = vsel %vm466, %v409, 0.0
    %v839 = vrot.slane %v838, 4
    %v840 = vadd.f32 %v838, %v839
    %v841 = vrot.slane %v840, 2
    %v842 = vadd.f32 %v840, %v841
    %v843 = vrot.slane %v842, 1
    %v844 = vadd.f32 %v842, %v843
    %v845 = vsel %vm466, %v410, 0.0
    %v846 = vrot.slane %v845, 4
    %v847 = vadd.f32 %v845, %v846
    %v848 = vrot.slane %v847, 2
    %v849 = vadd.f32 %v847, %v848
    %v850 = vrot.slane %v849, 1
    %v851 = vadd.f32 %v849, %v850
    %v852 = vsel %vm466, %v411, 0.0
    %v853 = vrot.slane %v852, 4
    %v854 = vadd.f32 %v852, %v853
    %v855 = vrot.slane %v854, 2
    %v856 = vadd.f32 %v854, %v855
    %v857 = vrot.slane %v856, 1
    %v858 = vadd.f32 %v856, %v857
    %v859 = vsel %vm466, %v236, 0.0
    %v860 = vrot.slane %v859, 4
    %v861 = vadd.f32 %v859, %v860
    %v862 = vrot.slane %v861, 2
    %v863 = vadd.f32 %v861, %v862
    %v864 = vrot.slane %v863, 1
    %v865 = vadd.f32 %v863, %v864
    %v866 = vsel %vm466, %v412, 0.0
    %v867 = vrot.slane %v866, 4
    %v868 = vadd.f32 %v866, %v867
    %v869 = vrot.slane %v868, 2
    %v870 = vadd.f32 %v868, %v869
    %v871 = vrot.slane %v870, 1
    %v872 = vadd.f32 %v870, %v871
    %v873 = vsel %vm466, %v413, 0.0
    %v874 = vrot.slane %v873, 4
    %v875 = vadd.f32 %v873, %v874
    %v876 = vrot.slane %v875, 2
    %v877 = vadd.f32 %v875, %v876
    %v878 = vrot.slane %v877, 1
    %v879 = vadd.f32 %v877, %v878
    %v880 = vsel %vm466, %v414, 0.0
    %v881 = vrot.slane %v880, 4
    %v882 = vadd.f32 %v880, %v881
    %v883 = vrot.slane %v882, 2
    %v884 = vadd.f32 %v882, %v883
    %v885 = vrot.slane %v884, 1
    %v886 = vadd.f32 %v884, %v885
    %v887 = vsel %vm466, %v239, 0.0
    %v888 = vrot.slane %v887, 4
    %v889 = vadd.f32 %v887, %v888
    %v890 = vrot.slane %v889, 2
    %v891 = vadd.f32 %v889, %v890
    %v892 = vrot.slane %v891, 1
    %v893 = vadd.f32 %v891, %v892
    %v894 = vsel %vm466, %v415, 0.0
    %v895 = vrot.slane %v894, 4
    %v896 = vadd.f32 %v894, %v895
    %v897 = vrot.slane %v896, 2
    %v898 = vadd.f32 %v896, %v897
    %v899 = vrot.slane %v898, 1
    %v900 = vadd.f32 %v898, %v899
    %v901 = vsel %vm466, %v416, 0.0
    %v902 = vrot.slane %v901, 4
    %v903 = vadd.f32 %v901, %v902
    %v904 = vrot.slane %v903, 2
    %v905 = vadd.f32 %v903, %v904
    %v906 = vrot.slane %v905, 1
    %v907 = vadd.f32 %v905, %v906
    %v908 = vsel %vm466, %v417, 0.0
    %v909 = vrot.slane %v908, 4
    %v910 = vadd.f32 %v908, %v909
    %v911 = vrot.slane %v910, 2
    %v912 = vadd.f32 %v910, %v911
    %v913 = vrot.slane %v912, 1
    %v914 = vadd.f32 %v912, %v913
    %v915 = vmul.f32 %v473, 0.5
    %v916 = vmul.f32 %v480, 0.5
    %v917 = vmul.f32 %v487, 0.5
    %v918 = vmul.f32 %v494, 0.5
    %v919 = vmul.f32 %v501, 0.5
    %v920 = vmul.f32 %v508, 0.5
    %v921 = vmul.f32 %v515, 0.5
    %v922 = vmul.f32 %v522, 0.5
    %v923 = vmul.f32 %v529, 0.5
    %v924 = vmul.f32 %v536, 0.5
    %v925 = vmul.f32 %v543, 0.5
    %v926 = vmul.f32 %v550, 0.5
    %v927 = vmul.f32 %v557, 0.5
    %v928 = vmul.f32 %v564, 0.5
    %v929 = vmul.f32 %v571, 0.5
    %v930 = vmul.f32 %v578, 0.5
    %v931 = vmul.f32 %v585, 0.5
    %v932 = vmul.f32 %v592, 0.5
    %v933 = vmul.f32 %v599, 0.5
    %v934 = vmul.f32 %v606, 0.5
    %v935 = vmul.f32 %v613, 0.5
    %v936 = vmul.f32 %v620, 0.5
    %v937 = vmul.f32 %v627, 0.5
    %v938 = vmul.f32 %v634, 0.5
    %v939 = vmul.f32 %v641, 0.5
    %v940 = vmul.f32 %v648, 0.5
    %v941 = vmul.f32 %v655, 0.5
    %v942 = vmul.f32 %v662, 0.5
    %v943 = vmul.f32 %v669, 0.5
    %v944 = vmul.f32 %v676, 0.5
    %v945 = vmul.f32 %v683, 0.5
    %v946 = vmul.f32 %v690, 0.5
    %v947 = vmul.f32 %v697, 0.5
    %v948 = vmul.f32 %v704, 0.5
    %v949 = vmul.f32 %v711, 0.5
    %v950 = vmul.f32 %v718, 0.5
    %v951 = vmul.f32 %v725, 0.5
    %v952 = vmul.f32 %v732, 0.5
    %v953 = vmul.f32 %v739, 0.5
    %v954 = vmul.f32 %v746, 0.5
    %v955 = vmul.f32 %v753, 0.5
    %v956 = vmul.f32 %v760, 0.5
    %v957 = vmul.f32 %v767, 0.5
    %v958 = vmul.f32 %v774, 0.5
    %v959 = vmul.f32 %v781, 0.5
    %v960 = vmul.f32 %v788, 0.5
    %v961 = vmul.f32 %v795, 0.5
    %v962 = vmul.f32 %v802, 0.5
    %v963 = vmul.f32 %v809, 0.5
    %v964 = vmul.f32 %v816, 0.5
    %v965 = vmul.f32 %v823, 0.5
    %v966 = vmul.f32 %v830, 0.5
    %v967 = vmul.f32 %v837, 0.5
    %v968 = vmul.f32 %v844, 0.5
    %v969 = vmul.f32 %v851, 0.5
    %v970 = vmul.f32 %v858, 0.5
    %v971 = vmul.f32 %v865, 0.5
    %v972 = vmul.f32 %v872, 0.5
    %v973 = vmul.f32 %v879, 0.5
    %v974 = vmul.f32 %v886, 0.5
    %v975 = vmul.f32 %v893, 0.5
    %v976 = vmul.f32 %v900, 0.5
    %v977 = vmul.f32 %v907, 0.5
    %v978 = vmul.f32 %v914, 0.5
    %v995 = vrot.slane %v307, 2
    %v996 = vrot.slane %v307, 4
    %v997 = vrot.slane %v307, 6
    %v998 = vrot.slane %v310, 2
    %v999 = vrot.slane %v310, 4
    %v1000 = vrot.slane %v310, 6
    %v1001 = vrot.slane %v313, 2
    %v1002 = vrot.slane %v313, 4
    %v1003 = vrot.slane %v313, 6
    %v1004 = vrot.slane %v316, 2
    %v1005 = vrot.slane %v316, 4
    %v1006 = vrot.slane %v316, 6
    %v1007 = vrot.slane %v319, 2
    %v1008 = vrot.slane %v319, 4
    %v1009 = vrot.slane %v319, 6
    %v1010 = vrot.slane %v322, 2
    %v1011 = vrot.slane %v322, 4
    %v1012 = vrot.slane %v322, 6
    %v1013 = vrot.slane %v325, 2
    %v1014 = vrot.slane %v325, 4
    %v1015 = vrot.slane %v325, 6
    %v1016 = vrot.slane %v328, 2
    %v1017 = vrot.slane %v328, 4
    %v1018 = vrot.slane %v328, 6
    %v1019 = vrot.slane %v331, 2
    %v1020 = vrot.slane %v331, 4
    %v1021 = vrot.slane %v331, 6
    %v1022 = vrot.slane %v334, 2
    %v1023 = vrot.slane %v334, 4
    %v1024 = vrot.slane %v334, 6
    %v1025 = vrot.slane %v337, 2
    %v1026 = vrot.slane %v337, 4
    %v1027 = vrot.slane %v337, 6
    %v1028 = vrot.slane %v340, 2
    %v1029 = vrot.slane %v340, 4
    %v1030 = vrot.slane %v340, 6
    %v1031 = vrot.slane %v343, 2
    %v1032 = vrot.slane %v343, 4
    %v1033 = vrot.slane %v343, 6
    %v1034 = vrot.slane %v346, 2
    %v1035 = vrot.slane %v346, 4
    %v1036 = vrot.slane %v346, 6
    %v1037 = vrot.slane %v349, 2
    %v1038 = vrot.slane %v349, 4
    %v1039 = vrot.slane %v349, 6
    %v1040 = vrot.slane %v352, 2
    %v1041 = vrot.slane %v352, 4
    %v1042 = vrot.slane %v352, 6
    %v1091 = vsel %vm466, %v307, 0.0
    %v1092 = vrot.slane %v1091, 4
    %v1093 = vadd.f32 %v1091, %v1092
    %v1094 = vrot.slane %v1093, 2
    %v1095 = vadd.f32 %v1093, %v1094
    %v1096 = vrot.slane %v1095, 1
    %v1097 = vadd.f32 %v1095, %v1096
    %v1098 = vsel %vm466, %v995, 0.0
    %v1099 = vrot.slane %v1098, 4
    %v1100 = vadd.f32 %v1098, %v1099
    %v1101 = vrot.slane %v1100, 2
    %v1102 = vadd.f32 %v1100, %v1101
    %v1103 = vrot.slane %v1102, 1
    %v1104 = vadd.f32 %v1102, %v1103
    %v1105 = vsel %vm466, %v996, 0.0
    %v1106 = vrot.slane %v1105, 4
    %v1107 = vadd.f32 %v1105, %v1106
    %v1108 = vrot.slane %v1107, 2
    %v1109 = vadd.f32 %v1107, %v1108
    %v1110 = vrot.slane %v1109, 1
    %v1111 = vadd.f32 %v1109, %v1110
    %v1112 = vsel %vm466, %v997, 0.0
    %v1113 = vrot.slane %v1112, 4
    %v1114 = vadd.f32 %v1112, %v1113
    %v1115 = vrot.slane %v1114, 2
    %v1116 = vadd.f32 %v1114, %v1115
    %v1117 = vrot.slane %v1116, 1
    %v1118 = vadd.f32 %v1116, %v1117
    %v1119 = vsel %vm466, %v310, 0.0
    %v1120 = vrot.slane %v1119, 4
    %v1121 = vadd.f32 %v1119, %v1120
    %v1122 = vrot.slane %v1121, 2
    %v1123 = vadd.f32 %v1121, %v1122
    %v1124 = vrot.slane %v1123, 1
    %v1125 = vadd.f32 %v1123, %v1124
    %v1126 = vsel %vm466, %v998, 0.0
    %v1127 = vrot.slane %v1126, 4
    %v1128 = vadd.f32 %v1126, %v1127
    %v1129 = vrot.slane %v1128, 2
    %v1130 = vadd.f32 %v1128, %v1129
    %v1131 = vrot.slane %v1130, 1
    %v1132 = vadd.f32 %v1130, %v1131
    %v1133 = vsel %vm466, %v999, 0.0
    %v1134 = vrot.slane %v1133, 4
    %v1135 = vadd.f32 %v1133, %v1134
    %v1136 = vrot.slane %v1135, 2
    %v1137 = vadd.f32 %v1135, %v1136
    %v1138 = vrot.slane %v1137, 1
    %v1139 = vadd.f32 %v1137, %v1138
    %v1140 = vsel %vm466, %v1000, 0.0
    %v1141 = vrot.slane %v1140, 4
    %v1142 = vadd.f32 %v1140, %v1141
    %v1143 = vrot.slane %v1142, 2
    %v1144 = vadd.f32 %v1142, %v1143
    %v1145 = vrot.slane %v1144, 1
    %v1146 = vadd.f32 %v1144, %v1145
    %v1147 = vsel %vm466, %v313, 0.0
    %v1148 = vrot.slane %v1147, 4
    %v1149 = vadd.f32 %v1147, %v1148
    %v1150 = vrot.slane %v1149, 2
    %v1151 = vadd.f32 %v1149, %v1150
    %v1152 = vrot.slane %v1151, 1
    %v1153 = vadd.f32 %v1151, %v1152
    %v1154 = vsel %vm466, %v1001, 0.0
    %v1155 = vrot.slane %v1154, 4
    %v1156 = vadd.f32 %v1154, %v1155
    %v1157 = vrot.slane %v1156, 2
    %v1158 = vadd.f32 %v1156, %v1157
    %v1159 = vrot.slane %v1158, 1
    %v1160 = vadd.f32 %v1158, %v1159
    %v1161 = vsel %vm466, %v1002, 0.0
    %v1162 = vrot.slane %v1161, 4
    %v1163 = vadd.f32 %v1161, %v1162
    %v1164 = vrot.slane %v1163, 2
    %v1165 = vadd.f32 %v1163, %v1164
    %v1166 = vrot.slane %v1165, 1
    %v1167 = vadd.f32 %v1165, %v1166
    %v1168 = vsel %vm466, %v1003, 0.0
    %v1169 = vrot.slane %v1168, 4
    %v1170 = vadd.f32 %v1168, %v1169
    %v1171 = vrot.slane %v1170, 2
    %v1172 = vadd.f32 %v1170, %v1171
    %v1173 = vrot.slane %v1172, 1
    %v1174 = vadd.f32 %v1172, %v1173
    %v1175 = vsel %vm466, %v316, 0.0
    %v1176 = vrot.slane %v1175, 4
    %v1177 = vadd.f32 %v1175, %v1176
    %v1178 = vrot.slane %v1177, 2
    %v1179 = vadd.f32 %v1177, %v1178
    %v1180 = vrot.slane %v1179, 1
    %v1181 = vadd.f32 %v1179, %v1180
    %v1182 = vsel %vm466, %v1004, 0.0
    %v1183 = vrot.slane %v1182, 4
    %v1184 = vadd.f32 %v1182, %v1183
    %v1185 = vrot.slane %v1184, 2
    %v1186 = vadd.f32 %v1184, %v1185
    %v1187 = vrot.slane %v1186, 1
    %v1188 = vadd.f32 %v1186, %v1187
    %v1189 = vsel %vm466, %v1005, 0.0
    %v1190 = vrot.slane %v1189, 4
    %v1191 = vadd.f32 %v1189, %v1190
    %v1192 = vrot.slane %v1191, 2
    %v1193 = vadd.f32 %v1191, %v1192
    %v1194 = vrot.slane %v1193, 1
    %v1195 = vadd.f32 %v1193, %v1194
    %v1196 = vsel %vm466, %v1006, 0.0
    %v1197 = vrot.slane %v1196, 4
    %v1198 = vadd.f32 %v1196, %v1197
    %v1199 = vrot.slane %v1198, 2
    %v1200 = vadd.f32 %v1198, %v1199
    %v1201 = vrot.slane %v1200, 1
    %v1202 = vadd.f32 %v1200, %v1201
    %v1203 = vsel %vm466, %v319, 0.0
    %v1204 = vrot.slane %v1203, 4
    %v1205 = vadd.f32 %v1203, %v1204
    %v1206 = vrot.slane %v1205, 2
    %v1207 = vadd.f32 %v1205, %v1206
    %v1208 = vrot.slane %v1207, 1
    %v1209 = vadd.f32 %v1207, %v1208
    %v1210 = vsel %vm466, %v1007, 0.0
    %v1211 = vrot.slane %v1210, 4
    %v1212 = vadd.f32 %v1210, %v1211
    %v1213 = vrot.slane %v1212, 2
    %v1214 = vadd.f32 %v1212, %v1213
    %v1215 = vrot.slane %v1214, 1
    %v1216 = vadd.f32 %v1214, %v1215
    %v1217 = vsel %vm466, %v1008, 0.0
    %v1218 = vrot.slane %v1217, 4
    %v1219 = vadd.f32 %v1217, %v1218
    %v1220 = vrot.slane %v1219, 2
    %v1221 = vadd.f32 %v1219, %v1220
    %v1222 = vrot.slane %v1221, 1
    %v1223 = vadd.f32 %v1221, %v1222
    %v1224 = vsel %vm466, %v1009, 0.0
    %v1225 = vrot.slane %v1224, 4
    %v1226 = vadd.f32 %v1224, %v1225
    %v1227 = vrot.slane %v1226, 2
    %v1228 = vadd.f32 %v1226, %v1227
    %v1229 = vrot.slane %v1228, 1
    %v1230 = vadd.f32 %v1228, %v1229
    %v1231 = vsel %vm466, %v322, 0.0
    %v1232 = vrot.slane %v1231, 4
    %v1233 = vadd.f32 %v1231, %v1232
    %v1234 = vrot.slane %v1233, 2
    %v1235 = vadd.f32 %v1233, %v1234
    %v1236 = vrot.slane %v1235, 1
    %v1237 = vadd.f32 %v1235, %v1236
    %v1238 = vsel %vm466, %v1010, 0.0
    %v1239 = vrot.slane %v1238, 4
    %v1240 = vadd.f32 %v1238, %v1239
    %v1241 = vrot.slane %v1240, 2
    %v1242 = vadd.f32 %v1240, %v1241
    %v1243 = vrot.slane %v1242, 1
    %v1244 = vadd.f32 %v1242, %v1243
    %v1245 = vsel %vm466, %v1011, 0.0
    %v1246 = vrot.slane %v1245, 4
    %v1247 = vadd.f32 %v1245, %v1246
    %v1248 = vrot.slane %v1247, 2
    %v1249 = vadd.f32 %v1247, %v1248
    %v1250 = vrot.slane %v1249, 1
    %v1251 = vadd.f32 %v1249, %v1250
    %v1252 = vsel %vm466, %v1012, 0.0
    %v1253 = vrot.slane %v1252, 4
    %v1254 = vadd.f32 %v1252, %v1253
    %v1255 = vrot.slane %v1254, 2
    %v1256 = vadd.f32 %v1254, %v1255
    %v1257 = vrot.slane %v1256, 1
    %v1258 = vadd.f32 %v1256, %v1257
    %v1259 = vsel %vm466, %v325, 0.0
    %v1260 = vrot.slane %v1259, 4
    %v1261 = vadd.f32 %v1259, %v1260
    %v1262 = vrot.slane %v1261, 2
    %v1263 = vadd.f32 %v1261, %v1262
    %v1264 = vrot.slane %v1263, 1
    %v1265 = vadd.f32 %v1263, %v1264
    %v1266 = vsel %vm466, %v1013, 0.0
    %v1267 = vrot.slane %v1266, 4
    %v1268 = vadd.f32 %v1266, %v1267
    %v1269 = vrot.slane %v1268, 2
    %v1270 = vadd.f32 %v1268, %v1269
    %v1271 = vrot.slane %v1270, 1
    %v1272 = vadd.f32 %v1270, %v1271
    %v1273 = vsel %vm466, %v1014, 0.0
    %v1274 = vrot.slane %v1273, 4
    %v1275 = vadd.f32 %v1273, %v1274
    %v1276 = vrot.slane %v1275, 2
    %v1277 = vadd.f32 %v1275, %v1276
    %v1278 = vrot.slane %v1277, 1
    %v1279 = vadd.f32 %v1277, %v1278
    %v1280 = vsel %vm466, %v1015, 0.0
    %v1281 = vrot.slane %v1280, 4
    %v1282 = vadd.f32 %v1280, %v1281
    %v1283 = vrot.slane %v1282, 2
    %v1284 = vadd.f32 %v1282, %v1283
    %v1285 = vrot.slane %v1284, 1
    %v1286 = vadd.f32 %v1284, %v1285
    %v1287 = vsel %vm466, %v328, 0.0
    %v1288 = vrot.slane %v1287, 4
    %v1289 = vadd.f32 %v1287, %v1288
    %v1290 = vrot.slane %v1289, 2
    %v1291 = vadd.f32 %v1289, %v1290
    %v1292 = vrot.slane %v1291, 1
    %v1293 = vadd.f32 %v1291, %v1292
    %v1294 = vsel %vm466, %v1016, 0.0
    %v1295 = vrot.slane %v1294, 4
    %v1296 = vadd.f32 %v1294, %v1295
    %v1297 = vrot.slane %v1296, 2
    %v1298 = vadd.f32 %v1296, %v1297
    %v1299 = vrot.slane %v1298, 1
    %v1300 = vadd.f32 %v1298, %v1299
    %v1301 = vsel %vm466, %v1017, 0.0
    %v1302 = vrot.slane %v1301, 4
    %v1303 = vadd.f32 %v1301, %v1302
    %v1304 = vrot.slane %v1303, 2
    %v1305 = vadd.f32 %v1303, %v1304
    %v1306 = vrot.slane %v1305, 1
    %v1307 = vadd.f32 %v1305, %v1306
    %v1308 = vsel %vm466, %v1018, 0.0
    %v1309 = vrot.slane %v1308, 4
    %v1310 = vadd.f32 %v1308, %v1309
    %v1311 = vrot.slane %v1310, 2
    %v1312 = vadd.f32 %v1310, %v1311
    %v1313 = vrot.slane %v1312, 1
    %v1314 = vadd.f32 %v1312, %v1313
    %v1315 = vsel %vm466, %v331, 0.0
    %v1316 = vrot.slane %v1315, 4
    %v1317 = vadd.f32 %v1315, %v1316
    %v1318 = vrot.slane %v1317, 2
    %v1319 = vadd.f32 %v1317, %v1318
    %v1320 = vrot.slane %v1319, 1
    %v1321 = vadd.f32 %v1319, %v1320
    %v1322 = vsel %vm466, %v1019, 0.0
    %v1323 = vrot.slane %v1322, 4
    %v1324 = vadd.f32 %v1322, %v1323
    %v1325 = vrot.slane %v1324, 2
    %v1326 = vadd.f32 %v1324, %v1325
    %v1327 = vrot.slane %v1326, 1
    %v1328 = vadd.f32 %v1326, %v1327
    %v1329 = vsel %vm466, %v1020, 0.0
    %v1330 = vrot.slane %v1329, 4
    %v1331 = vadd.f32 %v1329, %v1330
    %v1332 = vrot.slane %v1331, 2
    %v1333 = vadd.f32 %v1331, %v1332
    %v1334 = vrot.slane %v1333, 1
    %v1335 = vadd.f32 %v1333, %v1334
    %v1336 = vsel %vm466, %v1021, 0.0
    %v1337 = vrot.slane %v1336, 4
    %v1338 = vadd.f32 %v1336, %v1337
    %v1339 = vrot.slane %v1338, 2
    %v1340 = vadd.f32 %v1338, %v1339
    %v1341 = vrot.slane %v1340, 1
    %v1342 = vadd.f32 %v1340, %v1341
    %v1343 = vsel %vm466, %v334, 0.0
    %v1344 = vrot.slane %v1343, 4
    %v1345 = vadd.f32 %v1343, %v1344
    %v1346 = vrot.slane %v1345, 2
    %v1347 = vadd.f32 %v1345, %v1346
    %v1348 = vrot.slane %v1347, 1
    %v1349 = vadd.f32 %v1347, %v1348
    %v1350 = vsel %vm466, %v1022, 0.0
    %v1351 = vrot.slane %v1350, 4
    %v1352 = vadd.f32 %v1350, %v1351
    %v1353 = vrot.slane %v1352, 2
    %v1354 = vadd.f32 %v1352, %v1353
    %v1355 = vrot.slane %v1354, 1
    %v1356 = vadd.f32 %v1354, %v1355
    %v1357 = vsel %vm466, %v1023, 0.0
    %v1358 = vrot.slane %v1357, 4
    %v1359 = vadd.f32 %v1357, %v1358
    %v1360 = vrot.slane %v1359, 2
    %v1361 = vadd.f32 %v1359, %v1360
    %v1362 = vrot.slane %v1361, 1
    %v1363 = vadd.f32 %v1361, %v1362
    %v1364 = vsel %vm466, %v1024, 0.0
    %v1365 = vrot.slane %v1364, 4
    %v1366 = vadd.f32 %v1364, %v1365
    %v1367 = vrot.slane %v1366, 2
    %v1368 = vadd.f32 %v1366, %v1367
    %v1369 = vrot.slane %v1368, 1
    %v1370 = vadd.f32 %v1368, %v1369
    %v1371 = vsel %vm466, %v337, 0.0
    %v1372 = vrot.slane %v1371, 4
    %v1373 = vadd.f32 %v1371, %v1372
    %v1374 = vrot.slane %v1373, 2
    %v1375 = vadd.f32 %v1373, %v1374
    %v1376 = vrot.slane %v1375, 1
    %v1377 = vadd.f32 %v1375, %v1376
    %v1378 = vsel %vm466, %v1025, 0.0
    %v1379 = vrot.slane %v1378, 4
    %v1380 = vadd.f32 %v1378, %v1379
    %v1381 = vrot.slane %v1380, 2
    %v1382 = vadd.f32 %v1380, %v1381
    %v1383 = vrot.slane %v1382, 1
    %v1384 = vadd.f32 %v1382, %v1383
    %v1385 = vsel %vm466, %v1026, 0.0
    %v1386 = vrot.slane %v1385, 4
    %v1387 = vadd.f32 %v1385, %v1386
    %v1388 = vrot.slane %v1387, 2
    %v1389 = vadd.f32 %v1387, %v1388
    %v1390 = vrot.slane %v1389, 1
    %v1391 = vadd.f32 %v1389, %v1390
    %v1392 = vsel %vm466, %v1027, 0.0
    %v1393 = vrot.slane %v1392, 4
    %v1394 = vadd.f32 %v1392, %v1393
    %v1395 = vrot.slane %v1394, 2
    %v1396 = vadd.f32 %v1394, %v1395
    %v1397 = vrot.slane %v1396, 1
    %v1398 = vadd.f32 %v1396, %v1397
    %v1399 = vsel %vm466, %v340, 0.0
    %v1400 = vrot.slane %v1399, 4
    %v1401 = vadd.f32 %v1399, %v1400
    %v1402 = vrot.slane %v1401, 2
    %v1403 = vadd.f32 %v1401, %v1402
    %v1404 = vrot.slane %v1403, 1
    %v1405 = vadd.f32 %v1403, %v1404
    %v1406 = vsel %vm466, %v1028, 0.0
    %v1407 = vrot.slane %v1406, 4
    %v1408 = vadd.f32 %v1406, %v1407
    %v1409 = vrot.slane %v1408, 2
    %v1410 = vadd.f32 %v1408, %v1409
    %v1411 = vrot.slane %v1410, 1
    %v1412 = vadd.f32 %v1410, %v1411
    %v1413 = vsel %vm466, %v1029, 0.0
    %v1414 = vrot.slane %v1413, 4
    %v1415 = vadd.f32 %v1413, %v1414
    %v1416 = vrot.slane %v1415, 2
    %v1417 = vadd.f32 %v1415, %v1416
    %v1418 = vrot.slane %v1417, 1
    %v1419 = vadd.f32 %v1417, %v1418
    %v1420 = vsel %vm466, %v1030, 0.0
    %v1421 = vrot.slane %v1420, 4
    %v1422 = vadd.f32 %v1420, %v1421
    %v1423 = vrot.slane %v1422, 2
    %v1424 = vadd.f32 %v1422, %v1423
    %v1425 = vrot.slane %v1424, 1
    %v1426 = vadd.f32 %v1424, %v1425
    %v1427 = vsel %vm466, %v343, 0.0
    %v1428 = vrot.slane %v1427, 4
    %v1429 = vadd.f32 %v1427, %v1428
    %v1430 = vrot.slane %v1429, 2
    %v1431 = vadd.f32 %v1429, %v1430
    %v1432 = vrot.slane %v1431, 1
    %v1433 = vadd.f32 %v1431, %v1432
    %v1434 = vsel %vm466, %v1031, 0.0
    %v1435 = vrot.slane %v1434, 4
    %v1436 = vadd.f32 %v1434, %v1435
    %v1437 = vrot.slane %v1436, 2
    %v1438 = vadd.f32 %v1436, %v1437
    %v1439 = vrot.slane %v1438, 1
    %v1440 = vadd.f32 %v1438, %v1439
    %v1441 = vsel %vm466, %v1032, 0.0
    %v1442 = vrot.slane %v1441, 4
    %v1443 = vadd.f32 %v1441, %v1442
    %v1444 = vrot.slane %v1443, 2
    %v1445 = vadd.f32 %v1443, %v1444
    %v1446 = vrot.slane %v1445, 1
    %v1447 = vadd.f32 %v1445, %v1446
    %v1448 = vsel %vm466, %v1033, 0.0
    %v1449 = vrot.slane %v1448, 4
    %v1450 = vadd.f32 %v1448, %v1449
    %v1451 = vrot.slane %v1450, 2
    %v1452 = vadd.f32 %v1450, %v1451
    %v1453 = vrot.slane %v1452, 1
    %v1454 = vadd.f32 %v1452, %v1453
    %v1455 = vsel %vm466, %v346, 0.0
    %v1456 = vrot.slane %v1455, 4
    %v1457 = vadd.f32 %v1455, %v1456
    %v1458 = vrot.slane %v1457, 2
    %v1459 = vadd.f32 %v1457, %v1458
    %v1460 = vrot.slane %v1459, 1
    %v1461 = vadd.f32 %v1459, %v1460
    %v1462 = vsel %vm466, %v1034, 0.0
    %v1463 = vrot.slane %v1462, 4
    %v1464 = vadd.f32 %v1462, %v1463
    %v1465 = vrot.slane %v1464, 2
    %v1466 = vadd.f32 %v1464, %v1465
    %v1467 = vrot.slane %v1466, 1
    %v1468 = vadd.f32 %v1466, %v1467
    %v1469 = vsel %vm466, %v1035, 0.0
    %v1470 = vrot.slane %v1469, 4
    %v1471 = vadd.f32 %v1469, %v1470
    %v1472 = vrot.slane %v1471, 2
    %v1473 = vadd.f32 %v1471, %v1472
    %v1474 = vrot.slane %v1473, 1
    %v1475 = vadd.f32 %v1473, %v1474
    %v1476 = vsel %vm466, %v1036, 0.0
    %v1477 = vrot.slane %v1476, 4
    %v1478 = vadd.f32 %v1476, %v1477
    %v1479 = vrot.slane %v1478, 2
    %v1480 = vadd.f32 %v1478, %v1479
    %v1481 = vrot.slane %v1480, 1
    %v1482 = vadd.f32 %v1480, %v1481
    %v1483 = vsel %vm466, %v349, 0.0
    %v1484 = vrot.slane %v1483, 4
    %v1485 = vadd.f32 %v1483, %v1484
    %v1486 = vrot.slane %v1485, 2
    %v1487 = vadd.f32 %v1485, %v1486
    %v1488 = vrot.slane %v1487, 1
    %v1489 = vadd.f32 %v1487, %v1488
    %v1490 = vsel %vm466, %v1037, 0.0
    %v1491 = vrot.slane %v1490, 4
    %v1492 = vadd.f32 %v1490, %v1491
    %v1493 = vrot.slane %v1492, 2
    %v1494 = vadd.f32 %v1492, %v1493
    %v1495 = vrot.slane %v1494, 1
    %v1496 = vadd.f32 %v1494, %v1495
    %v1497 = vsel %vm466, %v1038, 0.0
    %v1498 = vrot.slane %v1497, 4
    %v1499 = vadd.f32 %v1497, %v1498
    %v1500 = vrot.slane %v1499, 2
    %v1501 = vadd.f32 %v1499, %v1500
    %v1502 = vrot.slane %v1501, 1
    %v1503 = vadd.f32 %v1501, %v1502
    %v1504 = vsel %vm466, %v1039, 0.0
    %v1505 = vrot.slane %v1504, 4
    %v1506 = vadd.f32 %v1504, %v1505
    %v1507 = vrot.slane %v1506, 2
    %v1508 = vadd.f32 %v1506, %v1507
    %v1509 = vrot.slane %v1508, 1
    %v1510 = vadd.f32 %v1508, %v1509
    %v1511 = vsel %vm466, %v352, 0.0
    %v1512 = vrot.slane %v1511, 4
    %v1513 = vadd.f32 %v1511, %v1512
    %v1514 = vrot.slane %v1513, 2
    %v1515 = vadd.f32 %v1513, %v1514
    %v1516 = vrot.slane %v1515, 1
    %v1517 = vadd.f32 %v1515, %v1516
    %v1518 = vsel %vm466, %v1040, 0.0
    %v1519 = vrot.slane %v1518, 4
    %v1520 = vadd.f32 %v1518, %v1519
    %v1521 = vrot.slane %v1520, 2
    %v1522 = vadd.f32 %v1520, %v1521
    %v1523 = vrot.slane %v1522, 1
    %v1524 = vadd.f32 %v1522, %v1523
    %v1525 = vsel %vm466, %v1041, 0.0
    %v1526 = vrot.slane %v1525, 4
    %v1527 = vadd.f32 %v1525, %v1526
    %v1528 = vrot.slane %v1527, 2
    %v1529 = vadd.f32 %v1527, %v1528
    %v1530 = vrot.slane %v1529, 1
    %v1531 = vadd.f32 %v1529, %v1530
    %v1532 = vsel %vm466, %v1042, 0.0
    %v1533 = vrot.slane %v1532, 4
    %v1534 = vadd.f32 %v1532, %v1533
    %v1535 = vrot.slane %v1534, 2
    %v1536 = vadd.f32 %v1534, %v1535
    %v1537 = vrot.slane %v1536, 1
    %v1538 = vadd.f32 %v1536, %v1537
    %v1539 = vmul.f32 %v1097, 0.5
    %v1540 = vmul.f32 %v1104, 0.5
    %v1541 = vmul.f32 %v1111, 0.5
    %v1542 = vmul.f32 %v1118, 0.5
    %v1543 = vmul.f32 %v1125, 0.5
    %v1544 = vmul.f32 %v1132, 0.5
    %v1545 = vmul.f32 %v1139, 0.5
    %v1546 = vmul.f32 %v1146, 0.5
    %v1547 = vmul.f32 %v1153, 0.5
    %v1548 = vmul.f32 %v1160, 0.5
    %v1549 = vmul.f32 %v1167, 0.5
    %v1550 = vmul.f32 %v1174, 0.5
    %v1551 = vmul.f32 %v1181, 0.5
    %v1552 = vmul.f32 %v1188, 0.5
    %v1553 = vmul.f32 %v1195, 0.5
    %v1554 = vmul.f32 %v1202, 0.5
    %v1555 = vmul.f32 %v1209, 0.5
    %v1556 = vmul.f32 %v1216, 0.5
    %v1557 = vmul.f32 %v1223, 0.5
    %v1558 = vmul.f32 %v1230, 0.5
    %v1559 = vmul.f32 %v1237, 0.5
    %v1560 = vmul.f32 %v1244, 0.5
    %v1561 = vmul.f32 %v1251, 0.5
    %v1562 = vmul.f32 %v1258, 0.5
    %v1563 = vmul.f32 %v1265, 0.5
    %v1564 = vmul.f32 %v1272, 0.5
    %v1565 = vmul.f32 %v1279, 0.5
    %v1566 = vmul.f32 %v1286, 0.5
    %v1567 = vmul.f32 %v1293, 0.5
    %v1568 = vmul.f32 %v1300, 0.5
    %v1569 = vmul.f32 %v1307, 0.5
    %v1570 = vmul.f32 %v1314, 0.5
    %v1571 = vmul.f32 %v1321, 0.5
    %v1572 = vmul.f32 %v1328, 0.5
    %v1573 = vmul.f32 %v1335, 0.5
    %v1574 = vmul.f32 %v1342, 0.5
    %v1575 = vmul.f32 %v1349, 0.5
    %v1576 = vmul.f32 %v1356, 0.5
    %v1577 = vmul.f32 %v1363, 0.5
    %v1578 = vmul.f32 %v1370, 0.5
    %v1579 = vmul.f32 %v1377, 0.5
    %v1580 = vmul.f32 %v1384, 0.5
    %v1581 = vmul.f32 %v1391, 0.5
    %v1582 = vmul.f32 %v1398, 0.5
    %v1583 = vmul.f32 %v1405, 0.5
    %v1584 = vmul.f32 %v1412, 0.5
    %v1585 = vmul.f32 %v1419, 0.5
    %v1586 = vmul.f32 %v1426, 0.5
    %v1587 = vmul.f32 %v1433, 0.5
    %v1588 = vmul.f32 %v1440, 0.5
    %v1589 = vmul.f32 %v1447, 0.5
    %v1590 = vmul.f32 %v1454, 0.5
    %v1591 = vmul.f32 %v1461, 0.5
    %v1592 = vmul.f32 %v1468, 0.5
    %v1593 = vmul.f32 %v1475, 0.5
    %v1594 = vmul.f32 %v1482, 0.5
    %v1595 = vmul.f32 %v1489, 0.5
    %v1596 = vmul.f32 %v1496, 0.5
    %v1597 = vmul.f32 %v1503, 0.5
    %v1598 = vmul.f32 %v1510, 0.5
    %v1599 = vmul.f32 %v1517, 0.5
    %v1600 = vmul.f32 %v1524, 0.5
    %v1601 = vmul.f32 %v1531, 0.5
    %v1602 = vmul.f32 %v1538, 0.5
    %v1603 = vmul.f32 %v915, %v915
    %v1604 = vmul.f32 %v916, %v916
    %v1605 = vmul.f32 %v917, %v917
    %v1606 = vmul.f32 %v918, %v918
    %v1607 = vmul.f32 %v919, %v919
    %v1608 = vmul.f32 %v920, %v920
    %v1609 = vmul.f32 %v921, %v921
    %v1610 = vmul.f32 %v922, %v922
    %v1611 = vmul.f32 %v923, %v923
    %v1612 = vmul.f32 %v924, %v924
    %v1613 = vmul.f32 %v925, %v925
    %v1614 = vmul.f32 %v926, %v926
    %v1615 = vmul.f32 %v927, %v927
    %v1616 = vmul.f32 %v928, %v928
    %v1617 = vmul.f32 %v929, %v929
    %v1618 = vmul.f32 %v930, %v930
    %v1619 = vmul.f32 %v931, %v931
    %v1620 = vmul.f32 %v932, %v932
    %v1621 = vmul.f32 %v933, %v933
    %v1622 = vmul.f32 %v934, %v934
    %v1623 = vmul.f32 %v935, %v935
    %v1624 = vmul.f32 %v936, %v936
    %v1625 = vmul.f32 %v937, %v937
    %v1626 = vmul.f32 %v938, %v938
    %v1627 = vmul.f32 %v939, %v939
    %v1628 = vmul.f32 %v940, %v940
    %v1629 = vmul.f32 %v941, %v941
    %v1630 = vmul.f32 %v942, %v942
    %v1631 = vmul.f32 %v943, %v943
    %v1632 = vmul.f32 %v944, %v944
    %v1633 = vmul.f32 %v945, %v945
    %v1634 = vmul.f32 %v946, %v946
    %v1635 = vmul.f32 %v947, %v947
    %v1636 = vmul.f32 %v948, %v948
    %v1637 = vmul.f32 %v949, %v949
    %v1638 = vmul.f32 %v950, %v950
    %v1639 = vmul.f32 %v951, %v951
    %v1640 = vmul.f32 %v952, %v952
    %v1641 = vmul.f32 %v953, %v953
    %v1642 = vmul.f32 %v954, %v954
    %v1643 = vmul.f32 %v955, %v955
    %v1644 = vmul.f32 %v956, %v956
    %v1645 = vmul.f32 %v957, %v957
    %v1646 = vmul.f32 %v958, %v958
    %v1647 = vmul.f32 %v959, %v959
    %v1648 = vmul.f32 %v960, %v960
    %v1649 = vmul.f32 %v961, %v961
    %v1650 = vmul.f32 %v962, %v962
    %v1651 = vmul.f32 %v963, %v963
    %v1652 = vmul.f32 %v964, %v964
    %v1653 = vmul.f32 %v965, %v965
    %v1654 = vmul.f32 %v966, %v966
    %v1655 = vmul.f32 %v967, %v967
    %v1656 = vmul.f32 %v968, %v968
    %v1657 = vmul.f32 %v969, %v969
    %v1658 = vmul.f32 %v970, %v970
    %v1659 = vmul.f32 %v971, %v971
    %v1660 = vmul.f32 %v972, %v972
    %v1661 = vmul.f32 %v973, %v973
    %v1662 = vmul.f32 %v974, %v974
    %v1663 = vmul.f32 %v975, %v975
    %v1664 = vmul.f32 %v976, %v976
    %v1665 = vmul.f32 %v977, %v977
    %v1666 = vmul.f32 %v978, %v978
    %vm1731 = vcmask 1041409
    %v1732 = vsel %vm1731, %v1604, %v1603
    %vm1733 = vcmask 1042434
    %v1734 = vsel %vm1733, %v1605, %v1732
    %vm1735 = vcmask 1043459
    %v1736 = vsel %vm1735, %v1606, %v1734
    %vm1737 = vcmask 1044484
    %v1738 = vsel %vm1737, %v1607, %v1736
    %vm1739 = vcmask 1045509
    %v1740 = vsel %vm1739, %v1608, %v1738
    %vm1741 = vcmask 1046534
    %v1742 = vsel %vm1741, %v1609, %v1740
    %vm1743 = vcmask 1047559
    %v1744 = vsel %vm1743, %v1610, %v1742
    %v1745 = vsel %vm1731, %v1612, %v1611
    %v1746 = vsel %vm1733, %v1613, %v1745
    %v1747 = vsel %vm1735, %v1614, %v1746
    %v1748 = vsel %vm1737, %v1615, %v1747
    %v1749 = vsel %vm1739, %v1616, %v1748
    %v1750 = vsel %vm1741, %v1617, %v1749
    %v1751 = vsel %vm1743, %v1618, %v1750
    %v1752 = vsel %vm1731, %v1620, %v1619
    %v1753 = vsel %vm1733, %v1621, %v1752
    %v1754 = vsel %vm1735, %v1622, %v1753
    %v1755 = vsel %vm1737, %v1623, %v1754
    %v1756 = vsel %vm1739, %v1624, %v1755
    %v1757 = vsel %vm1741, %v1625, %v1756
    %v1758 = vsel %vm1743, %v1626, %v1757
    %v1759 = vsel %vm1731, %v1628, %v1627
    %v1760 = vsel %vm1733, %v1629, %v1759
    %v1761 = vsel %vm1735, %v1630, %v1760
    %v1762 = vsel %vm1737, %v1631, %v1761
    %v1763 = vsel %vm1739, %v1632, %v1762
    %v1764 = vsel %vm1741, %v1633, %v1763
    %v1765 = vsel %vm1743, %v1634, %v1764
    %v1766 = vsel %vm1731, %v1636, %v1635
    %v1767 = vsel %vm1733, %v1637, %v1766
    %v1768 = vsel %vm1735, %v1638, %v1767
    %v1769 = vsel %vm1737, %v1639, %v1768
    %v1770 = vsel %vm1739, %v1640, %v1769
    %v1771 = vsel %vm1741, %v1641, %v1770
    %v1772 = vsel %vm1743, %v1642, %v1771
    %v1773 = vsel %vm1731, %v1644, %v1643
    %v1774 = vsel %vm1733, %v1645, %v1773
    %v1775 = vsel %vm1735, %v1646, %v1774
    %v1776 = vsel %vm1737, %v1647, %v1775
    %v1777 = vsel %vm1739, %v1648, %v1776
    %v1778 = vsel %vm1741, %v1649, %v1777
    %v1779 = vsel %vm1743, %v1650, %v1778
    %v1780 = vsel %vm1731, %v1652, %v1651
    %v1781 = vsel %vm1733, %v1653, %v1780
    %v1782 = vsel %vm1735, %v1654, %v1781
    %v1783 = vsel %vm1737, %v1655, %v1782
    %v1784 = vsel %vm1739, %v1656, %v1783
    %v1785 = vsel %vm1741, %v1657, %v1784
    %v1786 = vsel %vm1743, %v1658, %v1785
    %v1787 = vsel %vm1731, %v1660, %v1659
    %v1788 = vsel %vm1733, %v1661, %v1787
    %v1789 = vsel %vm1735, %v1662, %v1788
    %v1790 = vsel %vm1737, %v1663, %v1789
    %v1791 = vsel %vm1739, %v1664, %v1790
    %v1792 = vsel %vm1741, %v1665, %v1791
    %v1793 = vsel %vm1743, %v1666, %v1792
    %vm1802 = vcmask 261120
    %v1803 = vsel %vm1802, %v1744, 0.0
    %1804 = vadd.xlane.f32.xlu0 %v1803
    %v1805 = vpop.xlane.xlu0 %1804
    %v1806 = vsel %vm1802, %v1751, 0.0
    %1807 = vadd.xlane.f32.xlu0 %v1806
    %v1808 = vpop.xlane.xlu0 %1807
    %v1809 = vsel %vm1802, %v1758, 0.0
    %1810 = vadd.xlane.f32.xlu0 %v1809
    %v1811 = vpop.xlane.xlu0 %1810
    %v1812 = vsel %vm1802, %v1765, 0.0
    %1813 = vadd.xlane.f32.xlu0 %v1812
    %v1814 = vpop.xlane.xlu0 %1813
    %v1815 = vsel %vm1802, %v1772, 0.0
    %1816 = vadd.xlane.f32.xlu0 %v1815
    %v1817 = vpop.xlane.xlu0 %1816
    %v1818 = vsel %vm1802, %v1779, 0.0
    %1819 = vadd.xlane.f32.xlu0 %v1818
    %v1820 = vpop.xlane.xlu0 %1819
    %v1821 = vsel %vm1802, %v1786, 0.0
    %1822 = vadd.xlane.f32.xlu0 %v1821
    %v1823 = vpop.xlane.xlu0 %1822
    %v1824 = vsel %vm1802, %v1793, 0.0
    %1825 = vadd.xlane.f32.xlu0 %v1824
    %v1826 = vpop.xlane.xlu0 %1825
    %v1827 = vadd.f32 %v1805, %v1808
    %v1828 = vadd.f32 %v1827, %v1811
    %v1829 = vadd.f32 %v1828, %v1814
    %v1830 = vrot.slane %v1829, 4
    %v1831 = vadd.f32 %v1829, %v1830
    %v1832 = vrot.slane %v1831, 2
    %v1833 = vadd.f32 %v1831, %v1832
    %v1834 = vrot.slane %v1833, 1
    %v1835 = vadd.f32 %v1833, %v1834
    %v1836 = vadd.f32 %v1817, %v1820
    %v1837 = vadd.f32 %v1836, %v1823
    %v1838 = vadd.f32 %v1837, %v1826
    %v1839 = vrot.slane %v1838, 4
    %v1840 = vadd.f32 %v1838, %v1839
    %v1841 = vrot.slane %v1840, 2
    %v1842 = vadd.f32 %v1840, %v1841
    %v1843 = vrot.slane %v1842, 1
    %v1844 = vadd.f32 %v1842, %v1843
    %v1845 = vmul.f32 %v1539, %v1539
    %v1846 = vmul.f32 %v1540, %v1540
    %v1847 = vmul.f32 %v1541, %v1541
    %v1848 = vmul.f32 %v1542, %v1542
    %v1849 = vmul.f32 %v1543, %v1543
    %v1850 = vmul.f32 %v1544, %v1544
    %v1851 = vmul.f32 %v1545, %v1545
    %v1852 = vmul.f32 %v1546, %v1546
    %v1853 = vmul.f32 %v1547, %v1547
    %v1854 = vmul.f32 %v1548, %v1548
    %v1855 = vmul.f32 %v1549, %v1549
    %v1856 = vmul.f32 %v1550, %v1550
    %v1857 = vmul.f32 %v1551, %v1551
    %v1858 = vmul.f32 %v1552, %v1552
    %v1859 = vmul.f32 %v1553, %v1553
    %v1860 = vmul.f32 %v1554, %v1554
    %v1861 = vmul.f32 %v1555, %v1555
    %v1862 = vmul.f32 %v1556, %v1556
    %v1863 = vmul.f32 %v1557, %v1557
    %v1864 = vmul.f32 %v1558, %v1558
    %v1865 = vmul.f32 %v1559, %v1559
    %v1866 = vmul.f32 %v1560, %v1560
    %v1867 = vmul.f32 %v1561, %v1561
    %v1868 = vmul.f32 %v1562, %v1562
    %v1869 = vmul.f32 %v1563, %v1563
    %v1870 = vmul.f32 %v1564, %v1564
    %v1871 = vmul.f32 %v1565, %v1565
    %v1872 = vmul.f32 %v1566, %v1566
    %v1873 = vmul.f32 %v1567, %v1567
    %v1874 = vmul.f32 %v1568, %v1568
    %v1875 = vmul.f32 %v1569, %v1569
    %v1876 = vmul.f32 %v1570, %v1570
    %v1877 = vmul.f32 %v1571, %v1571
    %v1878 = vmul.f32 %v1572, %v1572
    %v1879 = vmul.f32 %v1573, %v1573
    %v1880 = vmul.f32 %v1574, %v1574
    %v1881 = vmul.f32 %v1575, %v1575
    %v1882 = vmul.f32 %v1576, %v1576
    %v1883 = vmul.f32 %v1577, %v1577
    %v1884 = vmul.f32 %v1578, %v1578
    %v1885 = vmul.f32 %v1579, %v1579
    %v1886 = vmul.f32 %v1580, %v1580
    %v1887 = vmul.f32 %v1581, %v1581
    %v1888 = vmul.f32 %v1582, %v1582
    %v1889 = vmul.f32 %v1583, %v1583
    %v1890 = vmul.f32 %v1584, %v1584
    %v1891 = vmul.f32 %v1585, %v1585
    %v1892 = vmul.f32 %v1586, %v1586
    %v1893 = vmul.f32 %v1587, %v1587
    %v1894 = vmul.f32 %v1588, %v1588
    %v1895 = vmul.f32 %v1589, %v1589
    %v1896 = vmul.f32 %v1590, %v1590
    %v1897 = vmul.f32 %v1591, %v1591
    %v1898 = vmul.f32 %v1592, %v1592
    %v1899 = vmul.f32 %v1593, %v1593
    %v1900 = vmul.f32 %v1594, %v1594
    %v1901 = vmul.f32 %v1595, %v1595
    %v1902 = vmul.f32 %v1596, %v1596
    %v1903 = vmul.f32 %v1597, %v1597
    %v1904 = vmul.f32 %v1598, %v1598
    %v1905 = vmul.f32 %v1599, %v1599
    %v1906 = vmul.f32 %v1600, %v1600
    %v1907 = vmul.f32 %v1601, %v1601
    %v1908 = vmul.f32 %v1602, %v1602
    %v1973 = vsel %vm1731, %v1846, %v1845
    %v1974 = vsel %vm1733, %v1847, %v1973
    %v1975 = vsel %vm1735, %v1848, %v1974
    %v1976 = vsel %vm1737, %v1849, %v1975
    %v1977 = vsel %vm1739, %v1850, %v1976
    %v1978 = vsel %vm1741, %v1851, %v1977
    %v1979 = vsel %vm1743, %v1852, %v1978
    %v1980 = vsel %vm1731, %v1854, %v1853
    %v1981 = vsel %vm1733, %v1855, %v1980
    %v1982 = vsel %vm1735, %v1856, %v1981
    %v1983 = vsel %vm1737, %v1857, %v1982
    %v1984 = vsel %vm1739, %v1858, %v1983
    %v1985 = vsel %vm1741, %v1859, %v1984
    %v1986 = vsel %vm1743, %v1860, %v1985
    %v1987 = vsel %vm1731, %v1862, %v1861
    %v1988 = vsel %vm1733, %v1863, %v1987
    %v1989 = vsel %vm1735, %v1864, %v1988
    %v1990 = vsel %vm1737, %v1865, %v1989
    %v1991 = vsel %vm1739, %v1866, %v1990
    %v1992 = vsel %vm1741, %v1867, %v1991
    %v1993 = vsel %vm1743, %v1868, %v1992
    %v1994 = vsel %vm1731, %v1870, %v1869
    %v1995 = vsel %vm1733, %v1871, %v1994
    %v1996 = vsel %vm1735, %v1872, %v1995
    %v1997 = vsel %vm1737, %v1873, %v1996
    %v1998 = vsel %vm1739, %v1874, %v1997
    %v1999 = vsel %vm1741, %v1875, %v1998
    %v2000 = vsel %vm1743, %v1876, %v1999
    %v2001 = vsel %vm1731, %v1878, %v1877
    %v2002 = vsel %vm1733, %v1879, %v2001
    %v2003 = vsel %vm1735, %v1880, %v2002
    %v2004 = vsel %vm1737, %v1881, %v2003
    %v2005 = vsel %vm1739, %v1882, %v2004
    %v2006 = vsel %vm1741, %v1883, %v2005
    %v2007 = vsel %vm1743, %v1884, %v2006
    %v2008 = vsel %vm1731, %v1886, %v1885
    %v2009 = vsel %vm1733, %v1887, %v2008
    %v2010 = vsel %vm1735, %v1888, %v2009
    %v2011 = vsel %vm1737, %v1889, %v2010
    %v2012 = vsel %vm1739, %v1890, %v2011
    %v2013 = vsel %vm1741, %v1891, %v2012
    %v2014 = vsel %vm1743, %v1892, %v2013
    %v2015 = vsel %vm1731, %v1894, %v1893
    %v2016 = vsel %vm1733, %v1895, %v2015
    %v2017 = vsel %vm1735, %v1896, %v2016
    %v2018 = vsel %vm1737, %v1897, %v2017
    %v2019 = vsel %vm1739, %v1898, %v2018
    %v2020 = vsel %vm1741, %v1899, %v2019
    %v2021 = vsel %vm1743, %v1900, %v2020
    %v2022 = vsel %vm1731, %v1902, %v1901
    %v2023 = vsel %vm1733, %v1903, %v2022
    %v2024 = vsel %vm1735, %v1904, %v2023
    %v2025 = vsel %vm1737, %v1905, %v2024
    %v2026 = vsel %vm1739, %v1906, %v2025
    %v2027 = vsel %vm1741, %v1907, %v2026
    %v2028 = vsel %vm1743, %v1908, %v2027
    %v2037 = vsel %vm1802, %v1979, 0.0
    %2038 = vadd.xlane.f32.xlu0 %v2037
    %v2039 = vpop.xlane.xlu0 %2038
    %v2040 = vsel %vm1802, %v1986, 0.0
    %2041 = vadd.xlane.f32.xlu0 %v2040
    %v2042 = vpop.xlane.xlu0 %2041
    %v2043 = vsel %vm1802, %v1993, 0.0
    %2044 = vadd.xlane.f32.xlu0 %v2043
    %v2045 = vpop.xlane.xlu0 %2044
    %v2046 = vsel %vm1802, %v2000, 0.0
    %2047 = vadd.xlane.f32.xlu0 %v2046
    %v2048 = vpop.xlane.xlu0 %2047
    %v2049 = vsel %vm1802, %v2007, 0.0
    %2050 = vadd.xlane.f32.xlu0 %v2049
    %v2051 = vpop.xlane.xlu0 %2050
    %v2052 = vsel %vm1802, %v2014, 0.0
    %2053 = vadd.xlane.f32.xlu0 %v2052
    %v2054 = vpop.xlane.xlu0 %2053
    %v2055 = vsel %vm1802, %v2021, 0.0
    %2056 = vadd.xlane.f32.xlu0 %v2055
    %v2057 = vpop.xlane.xlu0 %2056
    %v2058 = vsel %vm1802, %v2028, 0.0
    %2059 = vadd.xlane.f32.xlu0 %v2058
    %v2060 = vpop.xlane.xlu0 %2059
    %v2061 = vadd.f32 %v2039, %v2042
    %v2062 = vadd.f32 %v2061, %v2045
    %v2063 = vadd.f32 %v2062, %v2048
    %v2064 = vrot.slane %v2063, 4
    %v2065 = vadd.f32 %v2063, %v2064
    %v2066 = vrot.slane %v2065, 2
    %v2067 = vadd.f32 %v2065, %v2066
    %v2068 = vrot.slane %v2067, 1
    %v2069 = vadd.f32 %v2067, %v2068
    %v2070 = vadd.f32 %v2051, %v2054
    %v2071 = vadd.f32 %v2070, %v2057
    %v2072 = vadd.f32 %v2071, %v2060
    %v2073 = vrot.slane %v2072, 4
    %v2074 = vadd.f32 %v2072, %v2073
    %v2075 = vrot.slane %v2074, 2
    %v2076 = vadd.f32 %v2074, %v2075
    %v2077 = vrot.slane %v2076, 1
    %v2078 = vadd.f32 %v2076, %v2077
    %vm2079 = vcmask 7168
    %v2080 = vsel %vm2079, %v1835, %v2069
    %v2081 = vsel %vm2079, %v1844, %v2078
    %vm2082 = vcmask 8192
    %2083 = vst.msk [vmem:[%s5] sm:$0x1] %vm2082, %v2080
    %2084 = vst.msk [vmem:[%s5 + $0x1] sm:$0x1] %vm2082, %v2081
    // Predicated region
    $region22: #{noise_forward_pallas.1} parent=1 // pred_check
      _
    $region23: #{noise_forward_pallas.1} parent=1 // pred_check_branch
      %2086 = sbr.rel (0) target = $region25
    $region24: #{noise_forward_pallas.1} parent=1 // pred_region
      %2088 = vsyncadd [#allocation5], 0
      %s2089 = sshll.u32 [#allocation6], 4
      %s2090 = int_to_ptr.vmem [resolvable:$true] %s2089
      %s2091 = sshll.u32 %s4, 4
      %s2092 = int_to_ptr.hbm [resolvable:$true] %s2091
      %2097 = dma.vmem_to_hbm [thread:$0]  %s2090, 2048, %s2092, [#allocation5], 128, 128, 8
    $region25: #{noise_forward_pallas.1} parent=1 // pred_fallthru
      _
    // Predicated region
    $region26: #{noise_forward_pallas.1} parent=1 // pred_check
      _
    $region27: #{noise_forward_pallas.1} parent=1 // pred_check_branch
      %2099 = sbr.rel (0) target = $region29
    $region28: #{noise_forward_pallas.1} parent=1 // pred_region
      _
    $region29: #{noise_forward_pallas.1} parent=1 // pred_fallthru
      _
    // Predicated region
    $region30: #{noise_forward_pallas.1} parent=1 // pred_check
      _
    $region31: #{noise_forward_pallas.1} parent=1 // pred_check_branch
      %2101 = sbr.rel (0) target = $region33
    $region32: #{noise_forward_pallas.1} parent=1 // pred_region
      %2103 = dma.done [#allocation5], 2048
    $region33: #{noise_forward_pallas.1} parent=1 // pred_fallthru
      _
    // Predicated region
    $region34: #{noise_forward_pallas.1} parent=1 // pred_check
      _
    $region35: #{noise_forward_pallas.1} parent=1 // pred_check_branch
      %2105 = sbr.rel (0) target = $region37
    $region36: #{noise_forward_pallas.1} parent=1 // pred_region
      _
    $region37: #{noise_forward_pallas.1} parent=1 // pred_fallthru
      _
    %2106 = vsyncpa [#allocation4], 1
    %2107 = vsyncpa [#allocation5], 1

</llo_original>
